<compile_context>
chip_gen: v7x
topology: tpu7x:2x2x1
jax: 0.10.0
libtpu: 0.0.40
codegen_flags: <defaults>
</compile_context>

<pallas_src>
import math
import functools

import jax
import jax.numpy as jnp
from jax.experimental import pallas as pl
from jax.experimental.pallas import tpu as pltpu

# --- model dims (small, synthetic; see scaling notes above for real sizes) ---
B = 2          # batch
L = 8          # sequence length (multiple of 8 sublanes)
D = 32         # model size (rnn_size); real = 1024
H = 4          # attention heads; real = 8 (-> DK = 128, lane aligned)
DK = D // H
EPS = 1e-6


def aoa_refiner_kernel(x_ref, mask_ref, wqkv_ref, waoa_ref, vecs_ref, o_ref, *,
                       num_heads):
    bt, l, d = x_ref.shape                    # static block dims
    dk = d // num_heads
    mxu_dtype = wqkv_ref.dtype                # bf16 in production, f32 for validation

    x = x_ref[...].reshape(bt * l, d)         # residual rows, f32
    vecs = vecs_ref[...]                      # (7, D) packed small vectors
    a2, b2 = vecs[0:1], vecs[1:2]
    bq, bk, bv = vecs[2:3], vecs[3:4], vecs[4:5]
    b_i, b_g = vecs[5:6], vecs[6:7]

    # ---- LayerNorm (AoANet custom: mean, unbiased std, eps added to std), f32 ----
    mean = jnp.mean(x, axis=-1, keepdims=True)
    diff = x - mean
    var = jnp.sum(diff * diff, axis=-1, keepdims=True) / (d - 1)
    y = a2 * diff / (jnp.sqrt(var) + EPS) + b2                    # (bt*L, D) f32

    # ---- fused Q/K/V projection (scale folded into W_q/b_q), bf16 in / f32 acc ----
    qkv = jnp.dot(y.astype(mxu_dtype), wqkv_ref[...],
                  preferred_element_type=jnp.float32)             # (bt*L, 3D)
    q = (qkv[:, 0:d] + bq).reshape(bt, l, d)
    k = (qkv[:, d:2 * d] + bk).reshape(bt, l, d)
    v = (qkv[:, 2 * d:3 * d] + bv).reshape(bt, l, d)

    # additive key mask: 0 for kept keys, -1e9 for masked keys
    mask_bias = (mask_ref[...] - 1.0) * 1e9                       # (bt, 1, L)

    # ---- head-batched attention: per-head DK-wide matmuls ----
    # (no H-times redundant FLOPs, no (bt, H*L, D) intermediates; slices and the
    # head concat are lane-aligned at real DK=128)
    head_outs = []
    for h in range(num_heads):
        sl = slice(h * dk, (h + 1) * dk)
        qh = q[:, :, sl].astype(mxu_dtype)
        kh = k[:, :, sl].astype(mxu_dtype)
        vh = v[:, :, sl].astype(mxu_dtype)
        s = jnp.einsum('bqd,bkd->bqk', qh, kh,
                       preferred_element_type=jnp.float32)        # (bt, L, L) f32
        s = s + mask_bias
        s = s - jnp.max(s, axis=-1, keepdims=True)                # f32 softmax
        p = jnp.exp(s)
        p = p * pl.reciprocal(jnp.sum(p, axis=-1, keepdims=True), approx=True)
        head_outs.append(
            jnp.einsum('bqk,bkd->bqd', p.astype(mxu_dtype), vh,
                       preferred_element_type=jnp.float32))       # (bt, L, DK)
    attn = jnp.concatenate(head_outs, axis=-1).reshape(bt * l, d)  # concat heads

    # ---- AoA layer (GLU): [attn, y] @ W_aoa + b == attn@W_a + y@W_y + b ----
    z = (jnp.dot(attn.astype(mxu_dtype), waoa_ref[0],
                 preferred_element_type=jnp.float32)
         + jnp.dot(y.astype(mxu_dtype), waoa_ref[1],
                   preferred_element_type=jnp.float32))           # (bt*L, 2D)
    z_i = z[:, 0:d] + b_i
    z_g = z[:, d:2 * d] + b_g
    aoa = z_i * jax.nn.sigmoid(z_g)

    # ---- residual (dropout identity in eval mode) ----
    o_ref[...] = (x + aoa).reshape(bt, l, d)


def prepare_params(params, mxu_dtype=jnp.bfloat16):
    """One-time wrapper-side parameter re-packing (free)."""
    (a2, b2, wq, bq, wk, bk, wv, bv, waoa, baoa) = params
    d = wq.shape[0]
    scale = 1.0 / math.sqrt(d // H)
    # fused QKV weight, attention scale folded into the Q block; MXU dtype
    wqkv = jnp.concatenate([wq * scale, wk, wv], axis=1).astype(mxu_dtype)   # (D, 3D)
    # W_aoa split into two (D, 2D) blocks: [attn -> (i,g), y -> (i,g)]
    waoa2 = jnp.stack([waoa[:d, :], waoa[d:, :]], axis=0).astype(mxu_dtype)  # (2, D, 2D)
    # packed small vectors (kept f32): [a2, b2, bq*scale, bk, bv, b_i, b_g]
    vecs = jnp.concatenate([a2, b2, bq * scale, bk, bv,
                            baoa[:, :d], baoa[:, d:]], axis=0)               # (7, D)
    return wqkv, waoa2, vecs


def aoa_refiner_layer(x, mask, prepared, *, batch_tile=1):
    """x: (B, L, D) f32, mask: (B, L) f32 (1 = keep key, 0 = masked key)."""
    wqkv, waoa2, vecs = prepared
    b, l, d = x.shape
    bt = batch_tile
    assert b % bt == 0
    mask3 = mask.reshape(b, 1, l)   # (B, 1, L): partial block stays tile-legal
    kernel = functools.partial(aoa_refiner_kernel, num_heads=H)
    return pl.pallas_call(
        kernel,
        out_shape=jax.ShapeDtypeStruct((b, l, d), x.dtype),
        grid=(b // bt,),
        in_specs=[
            pl.BlockSpec((bt, l, d), lambda i: (i, 0, 0)),        # x tile
            pl.BlockSpec((bt, 1, l), lambda i: (i, 0, 0)),        # mask tile
            pl.BlockSpec((d, 3 * d), lambda i: (0, 0)),           # resident weights
            pl.BlockSpec((2, d, 2 * d), lambda i: (0, 0, 0)),     # resident weights
            pl.BlockSpec((7, d), lambda i: (0, 0)),               # resident vectors
        ],
        out_specs=pl.BlockSpec((bt, l, d), lambda i: (i, 0, 0)),
        compiler_params=pltpu.CompilerParams(
            dimension_semantics=("parallel",),          # megacore sharding on v7x
            vmem_limit_bytes=48 * 1024 * 1024),         # explicit budget (v7x: 64 MiB)
    )(x, mask3, wqkv, waoa2, vecs)


# ---------------- pure-JAX reference (PyTorch semantics) for verification ----------------
def reference(x, mask, params):
    (a2, b2, wq, bq, wk, bk, wv, bv, waoa, baoa) = params
    b, l, d = x.shape
    dk = d // H
    mean = jnp.mean(x, axis=-1, keepdims=True)
    diff = x - mean
    var = jnp.sum(diff * diff, axis=-1, keepdims=True) / (d - 1)
    y = a2 * diff / (jnp.sqrt(var) + EPS) + b2

    q = y @ wq + bq
    k = y @ wk + bk
    v = y @ wv + bv
    qh = q.reshape(b, l, H, dk).transpose(0, 2, 1, 3)
    kh = k.reshape(b, l, H, dk).transpose(0, 2, 1, 3)
    vh = v.reshape(b, l, H, dk).transpose(0, 2, 1, 3)
    s = jnp.einsum('bhqd,bhkd->bhqk', qh, kh) / math.sqrt(dk)
    s = jnp.where(mask[:, None, None, :] == 0.0, -1e9, s)
    p = jax.nn.softmax(s, axis=-1)
    o = jnp.einsum('bhqk,bhkd->bhqd', p, vh).transpose(0, 2, 1, 3).reshape(b, l, d)
    cat = jnp.concatenate([o, y], axis=-1)
    z = cat @ waoa + baoa
    aoa = z[..., :d] * jax.nn.sigmoid(z[..., d:])
    return x + aoa


def make_params(key):
    ks = jax.random.split(key, 8)
    a2 = jnp.ones((1, D), jnp.float32)           # LayerNorm weight init = ones
    b2 = jnp.zeros((1, D), jnp.float32)          # LayerNorm bias init = zeros
    wq = 0.1 * jax.random.normal(ks[0], (D, D), jnp.float32)
    bq = 0.1 * jax.random.normal(ks[1], (1, D), jnp.float32)
    wk = 0.1 * jax.random.normal(ks[2], (D, D), jnp.float32)
    bk = 0.1 * jax.random.normal(ks[3], (1, D), jnp.float32)
    wv = 0.1 * jax.random.normal(ks[4], (D, D), jnp.float32)
    bv = 0.1 * jax.random.normal(ks[5], (1, D), jnp.float32)
    waoa = 0.1 * jax.random.normal(ks[6], (2 * D, 2 * D), jnp.float32)
    baoa = 0.1 * jax.random.normal(ks[7], (1, 2 * D), jnp.float32)
    return (a2, b2, wq, bq, wk, bk, wv, bv, waoa, baoa)


if __name__ == "__main__":
    key = jax.random.PRNGKey(0)
    kx, kp = jax.random.split(key)
    x = jax.random.normal(kx, (B, L, D), jnp.float32)
    mask = jnp.ones((B, L), jnp.float32)
    mask = mask.at[1, -2:].set(0.0)              # mask out last 2 keys of batch 1
    params = make_params(kp)
    ref = reference(x, mask, params)

    # (1) f32-MXU validation run: only deliberate deviation is the approximate
    #     EUP reciprocal on the softmax denominator -> 2e-3 tolerance.
    out_f32 = aoa_refiner_layer(x, mask, prepare_params(params, jnp.float32))
    out_f32 = jax.block_until_ready(out_f32)
    assert out_f32.shape == (B, L, D)
    assert jnp.allclose(out_f32, ref, rtol=2e-3, atol=2e-3), (
        f"f32 max err {jnp.max(jnp.abs(out_f32 - ref))}")

    # (2) production config: bf16 MXU operands / weights, f32 accumulation and
    #     f32 LayerNorm/softmax math -> wider tolerance for the bf16 rounding.
    out_bf16 = aoa_refiner_layer(x, mask, prepare_params(params, jnp.bfloat16))
    out_bf16 = jax.block_until_ready(out_bf16)
    assert jnp.allclose(out_bf16, ref, rtol=2e-2, atol=2e-2), (
        f"bf16 max err {jnp.max(jnp.abs(out_bf16 - ref))}")

    print("KERNEL_OK")
</pallas_src>

<mosaic_0001>
module attributes {stable_mosaic.version = 11 : i64} {
  func.func @aoa_refiner_kernel(%arg0: i32, %arg1: memref<1x8x32xf32, #tpu.memory_space<vmem>>, %arg2: memref<1x1x8xf32, #tpu.memory_space<vmem>>, %arg3: memref<32x96xf32, #tpu.memory_space<vmem>>, %arg4: memref<2x32x64xf32, #tpu.memory_space<vmem>>, %arg5: memref<7x32xf32, #tpu.memory_space<vmem>>, %arg6: memref<1x8x32xf32, #tpu.memory_space<vmem>>) attributes {dimension_semantics = [#tpu.dimension_semantics<parallel>], iteration_bounds = array<i64: 2>, scalar_prefetch = 0 : i64, scratch_operands = 0 : i64, tpu.core_type = #tpu.core_type<tc>, window_params = [{transform_indices = @transform_0, window_bounds = array<i64: 1, 8, 32>}, {transform_indices = @transform_1, window_bounds = array<i64: 1, 1, 8>}, {pipeline_mode = #tpu.pipeline_mode<synchronous>, transform_indices = @transform_2, window_bounds = array<i64: 32, 96>}, {pipeline_mode = #tpu.pipeline_mode<synchronous>, transform_indices = @transform_3, window_bounds = array<i64: 2, 32, 64>}, {pipeline_mode = #tpu.pipeline_mode<synchronous>, transform_indices = @transform_4, window_bounds = array<i64: 7, 32>}, {transform_indices = @transform_5, window_bounds = array<i64: 1, 8, 32>}]} {
    %c0 = arith.constant 0 : index
    %c0_0 = arith.constant 0 : index
    %c0_1 = arith.constant 0 : index
    %0 = vector.load %arg1[%c0, %c0_0, %c0_1] : memref<1x8x32xf32, #tpu.memory_space<vmem>>, vector<1x8x32xf32>
    %1 = vector.shape_cast %0 : vector<1x8x32xf32> to vector<8x32xf32>
    %c0_2 = arith.constant 0 : index
    %c0_3 = arith.constant 0 : index
    %2 = vector.load %arg5[%c0_2, %c0_3] : memref<7x32xf32, #tpu.memory_space<vmem>>, vector<7x32xf32>
    %3 = vector.extract_strided_slice %2 {offsets = [0, 0], sizes = [1, 32], strides = [1, 1]} : vector<7x32xf32> to vector<1x32xf32>
    %4 = vector.extract_strided_slice %2 {offsets = [1, 0], sizes = [1, 32], strides = [1, 1]} : vector<7x32xf32> to vector<1x32xf32>
    %5 = vector.extract_strided_slice %2 {offsets = [2, 0], sizes = [1, 32], strides = [1, 1]} : vector<7x32xf32> to vector<1x32xf32>
    %6 = vector.extract_strided_slice %2 {offsets = [3, 0], sizes = [1, 32], strides = [1, 1]} : vector<7x32xf32> to vector<1x32xf32>
    %7 = vector.extract_strided_slice %2 {offsets = [4, 0], sizes = [1, 32], strides = [1, 1]} : vector<7x32xf32> to vector<1x32xf32>
    %8 = vector.extract_strided_slice %2 {offsets = [5, 0], sizes = [1, 32], strides = [1, 1]} : vector<7x32xf32> to vector<1x32xf32>
    %9 = vector.extract_strided_slice %2 {offsets = [6, 0], sizes = [1, 32], strides = [1, 1]} : vector<7x32xf32> to vector<1x32xf32>
    %cst = arith.constant dense<0.000000e+00> : vector<8xf32>
    %10 = vector.multi_reduction <add>, %1, %cst [1] : vector<8x32xf32> to vector<8xf32>
    %11 = vector.shape_cast %10 : vector<8xf32> to vector<8x1xf32>
    %cst_4 = arith.constant 3.200000e+01 : f32
    %12 = vector.broadcast %cst_4 : f32 to vector<8x1xf32>
    %13 = arith.divf %11, %12 : vector<8x1xf32>
    %14 = vector.broadcast %13 : vector<8x1xf32> to vector<8x32xf32>
    %15 = arith.subf %1, %14 : vector<8x32xf32>
    %16 = arith.mulf %15, %15 : vector<8x32xf32>
    %cst_5 = arith.constant dense<0.000000e+00> : vector<8xf32>
    %17 = vector.multi_reduction <add>, %16, %cst_5 [1] : vector<8x32xf32> to vector<8xf32>
    %18 = vector.shape_cast %17 : vector<8xf32> to vector<8x1xf32>
    %cst_6 = arith.constant 3.100000e+01 : f32
    %19 = vector.broadcast %cst_6 : f32 to vector<8x1xf32>
    %20 = arith.divf %18, %19 : vector<8x1xf32>
    %21 = vector.broadcast %3 : vector<1x32xf32> to vector<8x32xf32>
    %22 = arith.mulf %21, %15 : vector<8x32xf32>
    %23 = math.sqrt %20 : vector<8x1xf32>
    %cst_7 = arith.constant 9.99999997E-7 : f32
    %24 = vector.broadcast %cst_7 : f32 to vector<8x1xf32>
    %25 = arith.addf %23, %24 : vector<8x1xf32>
    %26 = vector.broadcast %25 : vector<8x1xf32> to vector<8x32xf32>
    %27 = arith.divf %22, %26 : vector<8x32xf32>
    %28 = vector.broadcast %4 : vector<1x32xf32> to vector<8x32xf32>
    %29 = arith.addf %27, %28 : vector<8x32xf32>
    %c0_8 = arith.constant 0 : index
    %c0_9 = arith.constant 0 : index
    %30 = vector.load %arg3[%c0_8, %c0_9] : memref<32x96xf32, #tpu.memory_space<vmem>>, vector<32x96xf32>
    %cst_10 = arith.constant dense<0.000000e+00> : vector<8x96xf32>
    %31 = tpu.matmul %29, %30, %cst_10 {dimension_numbers = #tpu.dot_dimension_numbers<[1], [0], [0], [1], [0, 0, 1, 1], [], []>} : vector<8x32xf32>, vector<32x96xf32>, vector<8x96xf32> -> vector<8x96xf32>
    %32 = vector.extract_strided_slice %31 {offsets = [0, 0], sizes = [8, 32], strides = [1, 1]} : vector<8x96xf32> to vector<8x32xf32>
    %33 = vector.broadcast %5 : vector<1x32xf32> to vector<8x32xf32>
    %34 = arith.addf %32, %33 : vector<8x32xf32>
    %35 = vector.shape_cast %34 : vector<8x32xf32> to vector<1x8x32xf32>
    %36 = vector.extract_strided_slice %31 {offsets = [0, 32], sizes = [8, 32], strides = [1, 1]} : vector<8x96xf32> to vector<8x32xf32>
    %37 = vector.broadcast %6 : vector<1x32xf32> to vector<8x32xf32>
    %38 = arith.addf %36, %37 : vector<8x32xf32>
    %39 = vector.shape_cast %38 : vector<8x32xf32> to vector<1x8x32xf32>
    %40 = vector.extract_strided_slice %31 {offsets = [0, 64], sizes = [8, 32], strides = [1, 1]} : vector<8x96xf32> to vector<8x32xf32>
    %41 = vector.broadcast %7 : vector<1x32xf32> to vector<8x32xf32>
    %42 = arith.addf %40, %41 : vector<8x32xf32>
    %43 = vector.shape_cast %42 : vector<8x32xf32> to vector<1x8x32xf32>
    %c0_11 = arith.constant 0 : index
    %c0_12 = arith.constant 0 : index
    %c0_13 = arith.constant 0 : index
    %44 = vector.load %arg2[%c0_11, %c0_12, %c0_13] : memref<1x1x8xf32, #tpu.memory_space<vmem>>, vector<1x1x8xf32>
    %cst_14 = arith.constant 1.000000e+00 : f32
    %45 = vector.broadcast %cst_14 : f32 to vector<1x1x8xf32>
    %46 = arith.subf %44, %45 : vector<1x1x8xf32>
    %cst_15 = arith.constant 1.000000e+09 : f32
    %47 = vector.broadcast %cst_15 : f32 to vector<1x1x8xf32>
    %48 = arith.mulf %46, %47 : vector<1x1x8xf32>
    %49 = vector.extract_strided_slice %35 {offsets = [0, 0, 0], sizes = [1, 8, 8], strides = [1, 1, 1]} : vector<1x8x32xf32> to vector<1x8x8xf32>
    %50 = vector.extract_strided_slice %39 {offsets = [0, 0, 0], sizes = [1, 8, 8], strides = [1, 1, 1]} : vector<1x8x32xf32> to vector<1x8x8xf32>
    %51 = vector.extract_strided_slice %43 {offsets = [0, 0, 0], sizes = [1, 8, 8], strides = [1, 1, 1]} : vector<1x8x32xf32> to vector<1x8x8xf32>
    "tpu.trace_start"() <{level = 10 : i32, message = "bqd,bkd->bqk"}> : () -> ()
    %cst_16 = arith.constant dense<0.000000e+00> : vector<1x8x8xf32>
    %52 = tpu.matmul %49, %50, %cst_16 {dimension_numbers = #tpu.dot_dimension_numbers<[2], [2], [1], [1], [0, 0, 0, 1, 1, 1], [0], [0]>} : vector<1x8x8xf32>, vector<1x8x8xf32>, vector<1x8x8xf32> -> vector<1x8x8xf32>
    "tpu.trace_stop"() : () -> ()
    %53 = vector.broadcast %48 : vector<1x1x8xf32> to vector<1x8x8xf32>
    %54 = arith.addf %52, %53 : vector<1x8x8xf32>
    %cst_17 = arith.constant dense<0xFF800000> : vector<1x8xf32>
    %55 = vector.multi_reduction <maximumf>, %54, %cst_17 [2] : vector<1x8x8xf32> to vector<1x8xf32>
    %56 = vector.shape_cast %55 : vector<1x8xf32> to vector<1x8x1xf32>
    %57 = vector.broadcast %56 : vector<1x8x1xf32> to vector<1x8x8xf32>
    %58 = arith.subf %54, %57 : vector<1x8x8xf32>
    %59 = math.exp %58 : vector<1x8x8xf32>
    %cst_18 = arith.constant dense<0.000000e+00> : vector<1x8xf32>
    %60 = vector.multi_reduction <add>, %59, %cst_18 [2] : vector<1x8x8xf32> to vector<1x8xf32>
    %61 = vector.shape_cast %60 : vector<1x8xf32> to vector<1x8x1xf32>
    %62 = tpu.reciprocal %61 {approx = true} : vector<1x8x1xf32> -> vector<1x8x1xf32>
    %63 = vector.broadcast %62 : vector<1x8x1xf32> to vector<1x8x8xf32>
    %64 = arith.mulf %59, %63 : vector<1x8x8xf32>
    "tpu.trace_start"() <{level = 10 : i32, message = "bqk,bkd->bqd"}> : () -> ()
    %cst_19 = arith.constant dense<0.000000e+00> : vector<1x8x8xf32>
    %65 = tpu.matmul %64, %51, %cst_19 {dimension_numbers = #tpu.dot_dimension_numbers<[2], [1], [1], [2], [0, 0, 0, 1, 1, 2], [0], [0]>} : vector<1x8x8xf32>, vector<1x8x8xf32>, vector<1x8x8xf32> -> vector<1x8x8xf32>
    "tpu.trace_stop"() : () -> ()
    %66 = vector.extract_strided_slice %35 {offsets = [0, 0, 8], sizes = [1, 8, 8], strides = [1, 1, 1]} : vector<1x8x32xf32> to vector<1x8x8xf32>
    %67 = vector.extract_strided_slice %39 {offsets = [0, 0, 8], sizes = [1, 8, 8], strides = [1, 1, 1]} : vector<1x8x32xf32> to vector<1x8x8xf32>
    %68 = vector.extract_strided_slice %43 {offsets = [0, 0, 8], sizes = [1, 8, 8], strides = [1, 1, 1]} : vector<1x8x32xf32> to vector<1x8x8xf32>
    "tpu.trace_start"() <{level = 10 : i32, message = "bqd,bkd->bqk"}> : () -> ()
    %cst_20 = arith.constant dense<0.000000e+00> : vector<1x8x8xf32>
    %69 = tpu.matmul %66, %67, %cst_20 {dimension_numbers = #tpu.dot_dimension_numbers<[2], [2], [1], [1], [0, 0, 0, 1, 1, 1], [0], [0]>} : vector<1x8x8xf32>, vector<1x8x8xf32>, vector<1x8x8xf32> -> vector<1x8x8xf32>
    "tpu.trace_stop"() : () -> ()
    %70 = vector.broadcast %48 : vector<1x1x8xf32> to vector<1x8x8xf32>
    %71 = arith.addf %69, %70 : vector<1x8x8xf32>
    %cst_21 = arith.constant dense<0xFF800000> : vector<1x8xf32>
    %72 = vector.multi_reduction <maximumf>, %71, %cst_21 [2] : vector<1x8x8xf32> to vector<1x8xf32>
    %73 = vector.shape_cast %72 : vector<1x8xf32> to vector<1x8x1xf32>
    %74 = vector.broadcast %73 : vector<1x8x1xf32> to vector<1x8x8xf32>
    %75 = arith.subf %71, %74 : vector<1x8x8xf32>
    %76 = math.exp %75 : vector<1x8x8xf32>
    %cst_22 = arith.constant dense<0.000000e+00> : vector<1x8xf32>
    %77 = vector.multi_reduction <add>, %76, %cst_22 [2] : vector<1x8x8xf32> to vector<1x8xf32>
    %78 = vector.shape_cast %77 : vector<1x8xf32> to vector<1x8x1xf32>
    %79 = tpu.reciprocal %78 {approx = true} : vector<1x8x1xf32> -> vector<1x8x1xf32>
    %80 = vector.broadcast %79 : vector<1x8x1xf32> to vector<1x8x8xf32>
    %81 = arith.mulf %76, %80 : vector<1x8x8xf32>
    "tpu.trace_start"() <{level = 10 : i32, message = "bqk,bkd->bqd"}> : () -> ()
    %cst_23 = arith.constant dense<0.000000e+00> : vector<1x8x8xf32>
    %82 = tpu.matmul %81, %68, %cst_23 {dimension_numbers = #tpu.dot_dimension_numbers<[2], [1], [1], [2], [0, 0, 0, 1, 1, 2], [0], [0]>} : vector<1x8x8xf32>, vector<1x8x8xf32>, vector<1x8x8xf32> -> vector<1x8x8xf32>
    "tpu.trace_stop"() : () -> ()
    %83 = vector.extract_strided_slice %35 {offsets = [0, 0, 16], sizes = [1, 8, 8], strides = [1, 1, 1]} : vector<1x8x32xf32> to vector<1x8x8xf32>
    %84 = vector.extract_strided_slice %39 {offsets = [0, 0, 16], sizes = [1, 8, 8], strides = [1, 1, 1]} : vector<1x8x32xf32> to vector<1x8x8xf32>
    %85 = vector.extract_strided_slice %43 {offsets = [0, 0, 16], sizes = [1, 8, 8], strides = [1, 1, 1]} : vector<1x8x32xf32> to vector<1x8x8xf32>
    "tpu.trace_start"() <{level = 10 : i32, message = "bqd,bkd->bqk"}> : () -> ()
    %cst_24 = arith.constant dense<0.000000e+00> : vector<1x8x8xf32>
    %86 = tpu.matmul %83, %84, %cst_24 {dimension_numbers = #tpu.dot_dimension_numbers<[2], [2], [1], [1], [0, 0, 0, 1, 1, 1], [0], [0]>} : vector<1x8x8xf32>, vector<1x8x8xf32>, vector<1x8x8xf32> -> vector<1x8x8xf32>
    "tpu.trace_stop"() : () -> ()
    %87 = vector.broadcast %48 : vector<1x1x8xf32> to vector<1x8x8xf32>
    %88 = arith.addf %86, %87 : vector<1x8x8xf32>
    %cst_25 = arith.constant dense<0xFF800000> : vector<1x8xf32>
    %89 = vector.multi_reduction <maximumf>, %88, %cst_25 [2] : vector<1x8x8xf32> to vector<1x8xf32>
    %90 = vector.shape_cast %89 : vector<1x8xf32> to vector<1x8x1xf32>
    %91 = vector.broadcast %90 : vector<1x8x1xf32> to vector<1x8x8xf32>
    %92 = arith.subf %88, %91 : vector<1x8x8xf32>
    %93 = math.exp %92 : vector<1x8x8xf32>
    %cst_26 = arith.constant dense<0.000000e+00> : vector<1x8xf32>
    %94 = vector.multi_reduction <add>, %93, %cst_26 [2] : vector<1x8x8xf32> to vector<1x8xf32>
    %95 = vector.shape_cast %94 : vector<1x8xf32> to vector<1x8x1xf32>
    %96 = tpu.reciprocal %95 {approx = true} : vector<1x8x1xf32> -> vector<1x8x1xf32>
    %97 = vector.broadcast %96 : vector<1x8x1xf32> to vector<1x8x8xf32>
    %98 = arith.mulf %93, %97 : vector<1x8x8xf32>
    "tpu.trace_start"() <{level = 10 : i32, message = "bqk,bkd->bqd"}> : () -> ()
    %cst_27 = arith.constant dense<0.000000e+00> : vector<1x8x8xf32>
    %99 = tpu.matmul %98, %85, %cst_27 {dimension_numbers = #tpu.dot_dimension_numbers<[2], [1], [1], [2], [0, 0, 0, 1, 1, 2], [0], [0]>} : vector<1x8x8xf32>, vector<1x8x8xf32>, vector<1x8x8xf32> -> vector<1x8x8xf32>
    "tpu.trace_stop"() : () -> ()
    %100 = vector.extract_strided_slice %35 {offsets = [0, 0, 24], sizes = [1, 8, 8], strides = [1, 1, 1]} : vector<1x8x32xf32> to vector<1x8x8xf32>
    %101 = vector.extract_strided_slice %39 {offsets = [0, 0, 24], sizes = [1, 8, 8], strides = [1, 1, 1]} : vector<1x8x32xf32> to vector<1x8x8xf32>
    %102 = vector.extract_strided_slice %43 {offsets = [0, 0, 24], sizes = [1, 8, 8], strides = [1, 1, 1]} : vector<1x8x32xf32> to vector<1x8x8xf32>
    "tpu.trace_start"() <{level = 10 : i32, message = "bqd,bkd->bqk"}> : () -> ()
    %cst_28 = arith.constant dense<0.000000e+00> : vector<1x8x8xf32>
    %103 = tpu.matmul %100, %101, %cst_28 {dimension_numbers = #tpu.dot_dimension_numbers<[2], [2], [1], [1], [0, 0, 0, 1, 1, 1], [0], [0]>} : vector<1x8x8xf32>, vector<1x8x8xf32>, vector<1x8x8xf32> -> vector<1x8x8xf32>
    "tpu.trace_stop"() : () -> ()
    %104 = vector.broadcast %48 : vector<1x1x8xf32> to vector<1x8x8xf32>
    %105 = arith.addf %103, %104 : vector<1x8x8xf32>
    %cst_29 = arith.constant dense<0xFF800000> : vector<1x8xf32>
    %106 = vector.multi_reduction <maximumf>, %105, %cst_29 [2] : vector<1x8x8xf32> to vector<1x8xf32>
    %107 = vector.shape_cast %106 : vector<1x8xf32> to vector<1x8x1xf32>
    %108 = vector.broadcast %107 : vector<1x8x1xf32> to vector<1x8x8xf32>
    %109 = arith.subf %105, %108 : vector<1x8x8xf32>
    %110 = math.exp %109 : vector<1x8x8xf32>
    %cst_30 = arith.constant dense<0.000000e+00> : vector<1x8xf32>
    %111 = vector.multi_reduction <add>, %110, %cst_30 [2] : vector<1x8x8xf32> to vector<1x8xf32>
    %112 = vector.shape_cast %111 : vector<1x8xf32> to vector<1x8x1xf32>
    %113 = tpu.reciprocal %112 {approx = true} : vector<1x8x1xf32> -> vector<1x8x1xf32>
    %114 = vector.broadcast %113 : vector<1x8x1xf32> to vector<1x8x8xf32>
    %115 = arith.mulf %110, %114 : vector<1x8x8xf32>
    "tpu.trace_start"() <{level = 10 : i32, message = "bqk,bkd->bqd"}> : () -> ()
    %cst_31 = arith.constant dense<0.000000e+00> : vector<1x8x8xf32>
    %116 = tpu.matmul %115, %102, %cst_31 {dimension_numbers = #tpu.dot_dimension_numbers<[2], [1], [1], [2], [0, 0, 0, 1, 1, 2], [0], [0]>} : vector<1x8x8xf32>, vector<1x8x8xf32>, vector<1x8x8xf32> -> vector<1x8x8xf32>
    "tpu.trace_stop"() : () -> ()
    %117 = tpu.concatenate %65, %82, %99, %116 in 2 : vector<1x8x8xf32>, vector<1x8x8xf32>, vector<1x8x8xf32>, vector<1x8x8xf32> -> vector<1x8x32xf32>
    %118 = vector.shape_cast %117 : vector<1x8x32xf32> to vector<8x32xf32>
    %c0_32 = arith.constant 0 : index
    %c0_33 = arith.constant 0 : index
    %c0_34 = arith.constant 0 : index
    %119 = vector.load %arg4[%c0_32, %c0_33, %c0_34] : memref<2x32x64xf32, #tpu.memory_space<vmem>>, vector<1x32x64xf32>
    %120 = vector.shape_cast %119 : vector<1x32x64xf32> to vector<32x64xf32>
    %cst_35 = arith.constant dense<0.000000e+00> : vector<8x64xf32>
    %121 = tpu.matmul %118, %120, %cst_35 {dimension_numbers = #tpu.dot_dimension_numbers<[1], [0], [0], [1], [0, 0, 1, 1], [], []>} : vector<8x32xf32>, vector<32x64xf32>, vector<8x64xf32> -> vector<8x64xf32>
    %c1 = arith.constant 1 : index
    %c0_36 = arith.constant 0 : index
    %c0_37 = arith.constant 0 : index
    %122 = vector.load %arg4[%c1, %c0_36, %c0_37] : memref<2x32x64xf32, #tpu.memory_space<vmem>>, vector<1x32x64xf32>
    %123 = vector.shape_cast %122 : vector<1x32x64xf32> to vector<32x64xf32>
    %cst_38 = arith.constant dense<0.000000e+00> : vector<8x64xf32>
    %124 = tpu.matmul %29, %123, %cst_38 {dimension_numbers = #tpu.dot_dimension_numbers<[1], [0], [0], [1], [0, 0, 1, 1], [], []>} : vector<8x32xf32>, vector<32x64xf32>, vector<8x64xf32> -> vector<8x64xf32>
    %125 = arith.addf %121, %124 : vector<8x64xf32>
    %126 = vector.extract_strided_slice %125 {offsets = [0, 0], sizes = [8, 32], strides = [1, 1]} : vector<8x64xf32> to vector<8x32xf32>
    %127 = vector.broadcast %8 : vector<1x32xf32> to vector<8x32xf32>
    %128 = arith.addf %126, %127 : vector<8x32xf32>
    %129 = vector.extract_strided_slice %125 {offsets = [0, 32], sizes = [8, 32], strides = [1, 1]} : vector<8x64xf32> to vector<8x32xf32>
    %130 = vector.broadcast %9 : vector<1x32xf32> to vector<8x32xf32>
    %131 = arith.addf %129, %130 : vector<8x32xf32>
    %132 = arith.negf %131 : vector<8x32xf32>
    %133 = math.exp %132 : vector<8x32xf32>
    %cst_39 = arith.constant 1.000000e+00 : f32
    %134 = vector.broadcast %cst_39 : f32 to vector<8x32xf32>
    %135 = arith.addf %134, %133 : vector<8x32xf32>
    %136 = arith.divf %134, %135 : vector<8x32xf32>
    %137 = arith.mulf %128, %136 : vector<8x32xf32>
    %138 = arith.addf %1, %137 : vector<8x32xf32>
    %139 = vector.shape_cast %138 : vector<8x32xf32> to vector<1x8x32xf32>
    %c0_40 = arith.constant 0 : index
    %c0_41 = arith.constant 0 : index
    %c0_42 = arith.constant 0 : index
    %140 = vector.load %arg6[%c0_40, %c0_41, %c0_42] : memref<1x8x32xf32, #tpu.memory_space<vmem>>, vector<1x8x32xf32>
    tpu.vector_store %arg6[%c0_40, %c0_41, %c0_42], %139 {strides = array<i32>} : memref<1x8x32xf32, #tpu.memory_space<vmem>>, vector<1x8x32xf32>,
    return
  }
  func.func @transform_0(%arg0: i32) -> (i32, i32, i32) {
    %c0_i32 = arith.constant 0 : i32
    %c0_i32_0 = arith.constant 0 : i32
    %c0_i32_1 = arith.constant 0 : i32
    return %arg0, %c0_i32, %c0_i32_0 : i32, i32, i32
  }
  func.func @transform_1(%arg0: i32) -> (i32, i32, i32) {
    %c0_i32 = arith.constant 0 : i32
    %c0_i32_0 = arith.constant 0 : i32
    %c0_i32_1 = arith.constant 0 : i32
    return %arg0, %c0_i32, %c0_i32_0 : i32, i32, i32
  }
  func.func @transform_2(%arg0: i32) -> (i32, i32) {
    %c0_i32 = arith.constant 0 : i32
    %c0_i32_0 = arith.constant 0 : i32
    %c0_i32_1 = arith.constant 0 : i32
    return %c0_i32, %c0_i32_0 : i32, i32
  }
  func.func @transform_3(%arg0: i32) -> (i32, i32, i32) {
    %c0_i32 = arith.constant 0 : i32
    %c0_i32_0 = arith.constant 0 : i32
    %c0_i32_1 = arith.constant 0 : i32
    %c0_i32_2 = arith.constant 0 : i32
    return %c0_i32, %c0_i32_0, %c0_i32_1 : i32, i32, i32
  }
  func.func @transform_4(%arg0: i32) -> (i32, i32) {
    %c0_i32 = arith.constant 0 : i32
    %c0_i32_0 = arith.constant 0 : i32
    %c0_i32_1 = arith.constant 0 : i32
    return %c0_i32, %c0_i32_0 : i32, i32
  }
  func.func @transform_5(%arg0: i32) -> (i32, i32, i32) {
    %c0_i32 = arith.constant 0 : i32
    %c0_i32_0 = arith.constant 0 : i32
    %c0_i32_1 = arith.constant 0 : i32
    return %arg0, %c0_i32, %c0_i32_0 : i32, i32, i32
  }
}

</mosaic_0001>

<llo_original>
// kernel: tpu_custom_call.1
$region0: #{tpu_custom_call.1}
  #allocation0 [shape = 'u32[]', space=smem, size = 0x4, offset = 0x4, fixed_abs, tag = 'smem constant byte address 0x4 - core index']
  #allocation1 [shape = 'u32[144,128]{1,0:T(1,128)}', space=vmem, size = 0x12000, scoped, tag = 'internal scratch']
  %s0 = inlined_call_operand.hbm [shape: f32[2,8,32], index: 0, kind: input, shape index: {}]
  %s1 = inlined_call_operand.vmem [shape: f32[2,1,8], index: 1, kind: input, shape index: {}]
  %s2 = inlined_call_operand.hbm [shape: f32[32,96], index: 2, kind: input, shape index: {}]
  %s3 = inlined_call_operand.hbm [shape: f32[2,32,64], index: 3, kind: input, shape index: {}]
  %s4 = inlined_call_operand.vmem [shape: f32[7,32], index: 4, kind: input, shape index: {}]
  %s5 = inlined_call_operand.hbm [shape: f32[2,8,32], index: 5, kind: output, shape index: {}]
  %s6 = sld [smem:[#allocation0]]
  $region65: #{tpu_custom_call.1} parent=0
    _
  %s8 = ssub.s32 1, %s6
  %s9 = scalar_select 0, %s8, %s6
  $region1: #{tpu_custom_call.1} parent=0
    #allocation2 [shape = 'u8[8192]{0}', space=vmem, size = 0x2000, scoped, tag = 'input window, operand 0']
    #allocation3 [shape = 's32[2]{0}', space=sflag, size = 0x8, scoped, tag = 'scoped memory for tpu_custom_call.1']
    #allocation4 [shape = 's32[2]{0}', space=sflag, size = 0x8, scoped, tag = 'scoped memory for tpu_custom_call.1']
    #allocation5 [shape = 'u8[16384]{0}', space=vmem, size = 0x4000, scoped, tag = 'input window, operand 2, single buffered']
    #allocation6 [shape = 's32[1]{0}', space=sflag, size = 0x4, scoped, tag = 'scoped memory for tpu_custom_call.1']
    #allocation7 [shape = 'u8[32768]{0}', space=vmem, size = 0x8000, scoped, tag = 'input window, operand 3, single buffered']
    #allocation8 [shape = 'u8[8192]{0}', space=vmem, size = 0x2000, scoped, tag = 'output window, operand 0']
    %10 = vsyncpa [#allocation3], 0
    %s11 = scalar_lea.sflag [#allocation3], 1
    %12 = vsyncpa %s11, 0
    %13 = vsyncpa [#allocation6], 0
    %14 = vsyncpa [#allocation4], 0
    %s15 = scalar_lea.sflag [#allocation4], 1
    %16 = vsyncpa %s15, 0
    loop: start=0, step=1, limit=4
    $region2: #{tpu_custom_call.1} parent=1 // loop_pre_header
      _
    $region3: #{tpu_custom_call.1} parent=1 // loop_header
      %s18 = sphi 0, %s22
      %p19 = scmp.ge.s32.totalorder %s18, 4
      %s28 = sphi 0, %s30
      %s31 = sphi 0, %s28
      %s32 = sphi 0, %s31
      %s48 = sphi 0, %s32
      %s54 = sphi 0, %s56
      %s57 = sphi 0, %s54
      %s58 = sphi 0, %s57
      %s74 = sphi 0, %s58
      %s78 = sphi 0, %s78
      %s80 = sphi 0, %s78
      %s81 = sphi 0, %s80
      %s95 = sphi 0, %s81
      %s99 = sphi 0, %s99
      %s101 = sphi 0, %s99
      %s102 = sphi 0, %s101
      %s116 = sphi 0, %s102
      %s120 = sphi 0, %s120
      %s122 = sphi 0, %s120
      %s123 = sphi 0, %s122
      %s137 = sphi 0, %s123
      %s143 = sphi 0, %s145
      %s146 = sphi 0, %s143
      %s147 = sphi 0, %s146
      %s163 = sphi 0, %s147
    $region4: #{tpu_custom_call.1} parent=1 // loop_header_branch
      %21 = sbr.rel (%p19) target = $region8
    $region5: #{tpu_custom_call.1} parent=1 // loop_body
      %s23 = ssub.s32 %s18, 1
      %s24 = ssub.s32 %s18, 2
      %s25 = sadd.s32 %s18, 1
      %s26 = ssub.s32 %s18, %s25
      %p27 = scmp.eq.s32.totalorder %s26, 0
      %s29 = sadd.s32 %s28, 1
      %s30 = scalar_select %p27, %s28, %s29
      %p33 = pneg %p27
      %p34 = scmp.eq.s32.totalorder %s18, 1
      %p35 = por %p33, %p34
      %p36 = scmp.ne.s32.totalorder %s28, %s31
      %p37 = scmp.eq.s32.totalorder %s18, 0
      %p38 = por %p36, %p37
      %p39 = scmp.ne.s32.totalorder %s28, %s31
      %p40 = scmp.eq.s32.totalorder %s23, 1
      %p41 = por %p39, %p40
      %p42 = scmp.ne.s32.totalorder %s31, %s32
      %p43 = scmp.eq.s32.totalorder %s23, 0
      %p44 = por %p42, %p43
      %p45 = scmp.ne.s32.totalorder %s31, %s32
      %p46 = scmp.eq.s32.totalorder %s24, 1
      %p47 = por %p45, %p46
      %p49 = scmp.ne.s32.totalorder %s32, %s48
      %p50 = scmp.eq.s32.totalorder %s24, 0
      %p51 = por %p49, %p50
      %s52 = ssub.s32 %s18, %s25
      %p53 = scmp.eq.s32.totalorder %s52, 0
      %s55 = sadd.s32 %s54, 1
      %s56 = scalar_select %p53, %s54, %s55
      %p59 = pneg %p53
      %p60 = scmp.eq.s32.totalorder %s18, 1
      %p61 = por %p59, %p60
      %p62 = scmp.ne.s32.totalorder %s54, %s57
      %p63 = scmp.eq.s32.totalorder %s18, 0
      %p64 = por %p62, %p63
      %p65 = scmp.ne.s32.totalorder %s54, %s57
      %p66 = scmp.eq.s32.totalorder %s23, 1
      %p67 = por %p65, %p66
      %p68 = scmp.ne.s32.totalorder %s57, %s58
      %p69 = scmp.eq.s32.totalorder %s23, 0
      %p70 = por %p68, %p69
      %p71 = scmp.ne.s32.totalorder %s57, %s58
      %p72 = scmp.eq.s32.totalorder %s24, 1
      %p73 = por %p71, %p72
      %p75 = scmp.ne.s32.totalorder %s58, %s74
      %p76 = scmp.eq.s32.totalorder %s24, 0
      %p77 = por %p75, %p76
      %s79 = sadd.s32 %s78, 1
      %p82 = scmp.eq.s32.totalorder %s18, 1
      %p83 = scmp.ne.s32.totalorder %s78, %s80
      %p84 = scmp.eq.s32.totalorder %s18, 0
      %p85 = por %p83, %p84
      %p86 = scmp.ne.s32.totalorder %s78, %s80
      %p87 = scmp.eq.s32.totalorder %s23, 1
      %p88 = por %p86, %p87
      %p89 = scmp.ne.s32.totalorder %s80, %s81
      %p90 = scmp.eq.s32.totalorder %s23, 0
      %p91 = por %p89, %p90
      %p92 = scmp.ne.s32.totalorder %s80, %s81
      %p93 = scmp.eq.s32.totalorder %s24, 1
      %p94 = por %p92, %p93
      %p96 = scmp.ne.s32.totalorder %s81, %s95
      %p97 = scmp.eq.s32.totalorder %s24, 0
      %p98 = por %p96, %p97
      %s100 = sadd.s32 %s99, 1
      %p103 = scmp.eq.s32.totalorder %s18, 1
      %p104 = scmp.ne.s32.totalorder %s99, %s101
      %p105 = scmp.eq.s32.totalorder %s18, 0
      %p106 = por %p104, %p105
      %p107 = scmp.ne.s32.totalorder %s99, %s101
      %p108 = scmp.eq.s32.totalorder %s23, 1
      %p109 = por %p107, %p108
      %p110 = scmp.ne.s32.totalorder %s101, %s102
      %p111 = scmp.eq.s32.totalorder %s23, 0
      %p112 = por %p110, %p111
      %p113 = scmp.ne.s32.totalorder %s101, %s102
      %p114 = scmp.eq.s32.totalorder %s24, 1
      %p115 = por %p113, %p114
      %p117 = scmp.ne.s32.totalorder %s102, %s116
      %p118 = scmp.eq.s32.totalorder %s24, 0
      %p119 = por %p117, %p118
      %s121 = sadd.s32 %s120, 1
      %p124 = scmp.eq.s32.totalorder %s18, 1
      %p125 = scmp.ne.s32.totalorder %s120, %s122
      %p126 = scmp.eq.s32.totalorder %s18, 0
      %p127 = por %p125, %p126
      %p128 = scmp.ne.s32.totalorder %s120, %s122
      %p129 = scmp.eq.s32.totalorder %s23, 1
      %p130 = por %p128, %p129
      %p131 = scmp.ne.s32.totalorder %s122, %s123
      %p132 = scmp.eq.s32.totalorder %s23, 0
      %p133 = por %p131, %p132
      %p134 = scmp.ne.s32.totalorder %s122, %s123
      %p135 = scmp.eq.s32.totalorder %s24, 1
      %p136 = por %p134, %p135
      %p138 = scmp.ne.s32.totalorder %s123, %s137
      %p139 = scmp.eq.s32.totalorder %s24, 0
      %p140 = por %p138, %p139
      %s141 = ssub.s32 %s18, %s25
      %p142 = scmp.eq.s32.totalorder %s141, 0
      %s144 = sadd.s32 %s143, 1
      %s145 = scalar_select %p142, %s143, %s144
      %p148 = pneg %p142
      %p149 = scmp.eq.s32.totalorder %s18, 1
      %p150 = por %p148, %p149
      %p151 = scmp.ne.s32.totalorder %s143, %s146
      %p152 = scmp.eq.s32.totalorder %s18, 0
      %p153 = por %p151, %p152
      %p154 = scmp.ne.s32.totalorder %s143, %s146
      %p155 = scmp.eq.s32.totalorder %s23, 1
      %p156 = por %p154, %p155
      %p157 = scmp.ne.s32.totalorder %s146, %s147
      %p158 = scmp.eq.s32.totalorder %s23, 0
      %p159 = por %p157, %p158
      %p160 = scmp.ne.s32.totalorder %s146, %s147
      %p161 = scmp.eq.s32.totalorder %s24, 1
      %p162 = por %p160, %p161
      %p164 = scmp.ne.s32.totalorder %s147, %s163
      %p165 = scmp.eq.s32.totalorder %s24, 0
      %p166 = por %p164, %p165
      %p167 = scmp.le.s32.totalorder 1, %s18
      %p168 = scmp.lt.s32.totalorder %s18, 3
      %p169 = pnand %p167, %p168
      %p170 = pneg %p169
      // Predicated region
      $region9: #{tpu_custom_call.1} parent=5 // pred_check
        _
      $region10: #{tpu_custom_call.1} parent=5 // pred_check_branch
        %172 = sbr.rel (%p169) target = $region12
      $region11: #{tpu_custom_call.1} parent=5 // pred_region
        %s173 = ssub.s32 %s18, 1
        // Predicated region
        $region13: #{tpu_custom_call.1} parent=11 // pred_check
          %p174 = pneg %p91
        $region14: #{tpu_custom_call.1} parent=11 // pred_check_branch
          %176 = sbr.rel (%p174) target = $region16
        $region15: #{tpu_custom_call.1} parent=11 // pred_region
          %s178 = ssub.s32 512, 512
          %179 = vsyncadd [#allocation6], %s178
          %s180 = sshll.u32 [#allocation5], 4
          %s181 = int_to_ptr.vmem [resolvable:$true] %s180
          %186 = dma.hbm_to_vmem [thread:$0]  %s2, 512, %s181, [#allocation6], 128, 128, 8
        $region16: #{tpu_custom_call.1} parent=11 // pred_fallthru
          _
        // Predicated region
        $region17: #{tpu_custom_call.1} parent=11 // pred_check
          %p187 = pneg %p112
        $region18: #{tpu_custom_call.1} parent=11 // pred_check_branch
          %189 = sbr.rel (%p187) target = $region20
        $region19: #{tpu_custom_call.1} parent=11 // pred_region
          %s191 = ssub.s32 1024, 1024
          %192 = vsyncadd [#allocation6], %s191
          %s193 = sshll.u32 [#allocation7], 4
          %s194 = int_to_ptr.vmem [resolvable:$true] %s193
          %199 = dma.hbm_to_vmem [thread:$0]  %s3, 1024, %s194, [#allocation6], 128, 128, 8
        $region20: #{tpu_custom_call.1} parent=11 // pred_fallthru
          _
        // Predicated region
        $region21: #{tpu_custom_call.1} parent=11 // pred_check
          %p200 = pneg %p133
        $region22: #{tpu_custom_call.1} parent=11 // pred_check_branch
          %202 = sbr.rel (%p200) target = $region24
        $region23: #{tpu_custom_call.1} parent=11 // pred_region
          _
        $region24: #{tpu_custom_call.1} parent=11 // pred_fallthru
          _
      $region12: #{tpu_custom_call.1} parent=5 // pred_fallthru
        _
      %p203 = scmp.lt.s32.totalorder %s18, 2
      // Predicated region
      $region25: #{tpu_custom_call.1} parent=5 // pred_check
        %p204 = pneg %p203
      $region26: #{tpu_custom_call.1} parent=5 // pred_check_branch
        %206 = sbr.rel (%p204) target = $region28
      $region27: #{tpu_custom_call.1} parent=5 // pred_region
        // Predicated region
        $region29: #{tpu_custom_call.1} parent=27 // pred_check
          %p207 = pneg %p38
        $region30: #{tpu_custom_call.1} parent=27 // pred_check_branch
          %209 = sbr.rel (%p207) target = $region32
        $region31: #{tpu_custom_call.1} parent=27 // pred_region
          %s210 = sand.u32 %s28, 1
          %s211 = scalar_lea.sflag [#allocation3], %s210
          %s212 = sand.u32 %s28, 1
          %s213 = smul.addr %s212, 8
          %s214 = scalar_lea.vmem [#allocation2], %s213
          %s216 = ssub.s32 128, 128
          %217 = vsyncadd %s211, %s216
          %s218 = smul.addr %s18, 128
          %s219 = scalar_lea.hbm %s0, %s218
          %s221 = sshll.u32 %s214, 4
          %s222 = int_to_ptr.vmem [resolvable:$true] %s221
          %224 = dma.hbm_to_vmem [thread:$0]  %s219, 128, %s222, %s211
        $region32: #{tpu_custom_call.1} parent=27 // pred_fallthru
          _
        // Predicated region
        $region33: #{tpu_custom_call.1} parent=27 // pred_check
          %p225 = pneg %p64
        $region34: #{tpu_custom_call.1} parent=27 // pred_check_branch
          %227 = sbr.rel (%p225) target = $region36
        $region35: #{tpu_custom_call.1} parent=27 // pred_region
          %p228 = scmp.lt.s32.totalorder %s18, 1
          %s229 = scalar_select %p228, %s18, 1
          %s230 = scalar_lea.vmem %s1, %s229
        $region36: #{tpu_custom_call.1} parent=27 // pred_fallthru
          _
      $region28: #{tpu_custom_call.1} parent=5 // pred_fallthru
        _
      %p231 = scmp.le.s32.totalorder 1, %s18
      %p232 = scmp.lt.s32.totalorder %s18, 3
      %p233 = pnand %p231, %p232
      %p234 = pneg %p233
      // Predicated region
      $region37: #{tpu_custom_call.1} parent=5 // pred_check
        _
      $region38: #{tpu_custom_call.1} parent=5 // pred_check_branch
        %236 = sbr.rel (%p233) target = $region40
      $region39: #{tpu_custom_call.1} parent=5 // pred_region
        %s237 = ssub.s32 %s18, 1
        %s238 = sand.u32 %s31, 1
        %s239 = scalar_lea.sflag [#allocation3], %s238
        %s240 = sand.u32 %s31, 1
        %s241 = smul.addr %s240, 8
        %s242 = scalar_lea.vmem [#allocation2], %s241
        // Predicated region
        $region41: #{tpu_custom_call.1} parent=39 // pred_check
          %p243 = pneg %p44
        $region42: #{tpu_custom_call.1} parent=39 // pred_check_branch
          %245 = sbr.rel (%p243) target = $region44
        $region43: #{tpu_custom_call.1} parent=39 // pred_region
          %246 = dma.done %s239, 128
        $region44: #{tpu_custom_call.1} parent=39 // pred_fallthru
          _
        // Predicated region
        $region45: #{tpu_custom_call.1} parent=39 // pred_check
          %p247 = pneg %p91
        $region46: #{tpu_custom_call.1} parent=39 // pred_check_branch
          %249 = sbr.rel (%p247) target = $region48
        $region47: #{tpu_custom_call.1} parent=39 // pred_region
          %250 = dma.done [#allocation6], 512
        $region48: #{tpu_custom_call.1} parent=39 // pred_fallthru
          _
        // Predicated region
        $region49: #{tpu_custom_call.1} parent=39 // pred_check
          %p251 = pneg %p112
        $region50: #{tpu_custom_call.1} parent=39 // pred_check_branch
          %253 = sbr.rel (%p251) target = $region52
        $region51: #{tpu_custom_call.1} parent=39 // pred_region
          %254 = dma.done [#allocation6], 1024
        $region52: #{tpu_custom_call.1} parent=39 // pred_fallthru
          _
        %s255 = sand.u32 %s31, 1
        %s256 = scalar_lea.sflag [#allocation3], %s255
        %s257 = sand.u32 %s31, 1
        %s258 = smul.addr %s257, 8
        %s259 = scalar_lea.vmem [#allocation2], %s258
        %p260 = pneg %p44
        %p261 = pneg %p41
        %p262 = scmp.lt.s32.totalorder %s23, 1
        %s263 = scalar_select %p262, %s23, 1
        %s264 = scalar_lea.vmem %s1, %s263
        %p265 = pneg %p70
        %p266 = pneg %p67
        %p267 = pneg %p91
        %p268 = pneg %p88
        %p269 = pneg %p112
        %p270 = pneg %p109
        %p271 = pneg %p133
        %p272 = pneg %p130
        %p273 = pneg %p159
        %p274 = pneg %p156
        %s275 = sand.u32 %s146, 1
        %s276 = scalar_lea.sflag [#allocation4], %s275
        %s277 = sand.u32 %s146, 1
        %s278 = smul.addr %s277, 8
        %s279 = scalar_lea.vmem [#allocation8], %s278
        %p280 = scmp.lt.s32.totalorder %s23, 1
        %s281 = scalar_select %p280, %s23, 1
        %s282 = scalar_lea.vmem %s1, %s281
        %v283 = vld [vmem:[%s242] sm:$0xff]
        %v284 = vld [vmem:[%s4] sm:$0x7f]
        %vm285 = vcmask 261120
        %v286 = vsel %vm285, %v283, 0.0
        %287 = vadd.xlane.f32.xlu0 %v286
        %v288 = vpop.xlane.xlu0 %287
        %v289 = vrcp.pop 32.0
        %v290 = vmul.f32 %v288, %v289
        %v291 = vsub.f32 %v283, %v290
        %v292 = vmul.f32 %v291, %v291
        %v293 = vsel %vm285, %v292, 0.0
        %294 = vadd.xlane.f32.xlu0 %v293
        %v295 = vpop.xlane.xlu0 %294
        %v296 = vrcp.pop 31.0
        %v297 = vmul.f32 %v295, %v296
        %v298 = vlaneseq
        %v299 = vshrl.u32 %v298, 7
        %v300 = vsub.s32 0, %v299
        %v301 = vrot.slane %v284, %v300
        %v302 = vmul.f32 %v301, %v291
        %v303 = vrsqrt.pop %v297
        %v304 = vmul.f32 %v297, %v303
        %vm305 = vcmp.eq.f32.partialorder %v297, inf
        %v306 = vsel %vm305, %v297, %v304
        %vm307 = vcmp.eq.f32.partialorder %v297, 0.0
        %v308 = vand.u32 %v297, 2147483648
        %v309 = vsel %vm307, %v308, %v306
        %v310 = vadd.f32 %v309, 1e-06
        %v311 = vrcp.pop %v310
        %v312 = vmul.f32 %v302, %v311
        %v313 = vlaneseq
        %v314 = vshrl.u32 %v313, 7
        %v315 = vsub.s32 1, %v314
        %v316 = vrot.slane %v284, %v315
        %v317 = vadd.f32 %v312, %v316
        %v318 = vld [vmem:[#allocation5] sm:$0xff]
        %v319 = vld [vmem:[#allocation5 + $0x8] sm:$0xff]
        %v320 = vld [vmem:[#allocation5 + $0x10] sm:$0xff]
        %v321 = vld [vmem:[#allocation5 + $0x18] sm:$0xff]
        %v323 = vsel %vm285, %v317, 0
        %325 = vmatprep.subr.mxu0 0.0
        %326 = vmatpush1.msra.mxu0 %v318
        %327 = vmatprep.subr.mxu0 0.0
        %328 = vmatpush1.msra.mxu0 %v319
        %329 = vmatprep.subr.mxu0 0.0
        %330 = vmatpush1.msra.mxu0 %v320
        %331 = vmatprep.subr.mxu0 0.0
        %332 = vmatpush1.msra.mxu0 %v321
        %333 = vmatprep.subr.mxu0 0.0
        %334 = vmatpush1.msra.mxu0 0.0
        %335 = vmatprep.subr.mxu0 0.0
        %336 = vmatpush1.msra.mxu0 0.0
        %337 = vmatprep.subr.mxu0 0.0
        %338 = vmatpush1.msra.mxu0 0.0
        %339 = vmatprep.subr.mxu0 0.0
        %340 = vmatpush1.msra.mxu0 0.0
        %341 = vmatprep.subr.mxu0 0.0
        %342 = vmatpush1.msra.mxu0 0.0
        %343 = vmatprep.subr.mxu0 0.0
        %344 = vmatpush1.msra.mxu0 0.0
        %345 = vmatprep.subr.mxu0 0.0
        %346 = vmatpush1.msra.mxu0 0.0
        %347 = vmatprep.subr.mxu0 0.0
        %348 = vmatpush1.msra.mxu0 0.0
        %349 = vmatprep.subr.mxu0 0.0
        %350 = vmatpush1.msra.mxu0 0.0
        %351 = vmatprep.subr.mxu0 0.0
        %352 = vmatpush1.msra.mxu0 0.0
        %353 = vmatprep.subr.mxu0 0.0
        %354 = vmatpush1.msra.mxu0 0.0
        %355 = vmatprep.subr.mxu0 0.0
        %356 = vmatpush1.msra.mxu0 0.0
        %357 = vmatprep.subr.mxu0 0.0
        %358 = vmatpush1.msra.mxu0 0.0
        %359 = vmatprep.subr.mxu0 0.0
        %360 = vmatpush1.msra.mxu0 0.0
        %361 = vmatprep.subr.mxu0 0.0
        %362 = vmatpush1.msra.mxu0 0.0
        %363 = vmatprep.subr.mxu0 0.0
        %364 = vmatpush1.msra.mxu0 0.0
        %365 = vmatprep.subr.mxu0 0.0
        %366 = vmatpush1.msra.mxu0 0.0
        %367 = vmatprep.subr.mxu0 0.0
        %368 = vmatpush1.msra.mxu0 0.0
        %369 = vmatprep.subr.mxu0 0.0
        %370 = vmatpush1.msra.mxu0 0.0
        %371 = vmatprep.subr.mxu0 0.0
        %372 = vmatpush1.msra.mxu0 0.0
        %373 = vmatprep.subr.mxu0 0.0
        %374 = vmatpush1.msra.mxu0 0.0
        %375 = vmatprep.subr.mxu0 0.0
        %376 = vmatpush1.msra.mxu0 0.0
        %377 = vmatprep.subr.mxu0 0.0
        %378 = vmatpush1.msra.mxu0 0.0
        %379 = vmatprep.subr.mxu0 0.0
        %380 = vmatpush1.msra.mxu0 0.0
        %381 = vmatprep.subr.mxu0 0.0
        %382 = vmatpush1.msra.mxu0 0.0
        %383 = vmatprep.subr.mxu0 0.0
        %384 = vmatpush1.msra.mxu0 0.0
        %385 = vmatprep.subr.mxu0 0.0
        %386 = vmatpush1.msra.mxu0 0.0
        %387 = vmatprep.subr.mxu0 0.0
        %388 = vmatpush1.msra.mxu0 0.0
        %389 = vmatprep.mubr.f32.mxu0 0.0
        %390 = vmatmul.mubr.f32.gmra.mrb[0].mxu0 %v323
        %v391 = vpop.f32.mrb[0].mxu0
        %v392 = vadd.f32 0.0, %v391
        %v393 = vpop.f32.mrb[0].mxu0
        %394 = vdwg.mxu0
        %v395 = vlaneseq
        %v396 = vshrl.u32 %v395, 7
        %v397 = vsub.s32 2, %v396
        %v398 = vrot.slane %v284, %v397
        %v399 = vadd.f32 %v392, %v398
        %v400 = vlaneseq
        %v401 = vshrl.u32 %v400, 7
        %v402 = vsub.s32 3, %v401
        %v403 = vrot.slane %v284, %v402
        %405 = vrot.lane.b32.xlu0 %v403, 32
        %v406 = vpop.permute.xlu0 %405
        %v408 = vadd.f32 %v392, %v406
        %v409 = vlaneseq
        %v410 = vshrl.u32 %v409, 7
        %v411 = vsub.s32 4, %v410
        %v412 = vrot.slane %v284, %v411
        %414 = vrot.lane.b32.xlu0 %v412, 64
        %v415 = vpop.permute.xlu0 %414
        %v417 = vadd.f32 %v392, %v415
        %v418 = vld [vmem:[%s282] sm:$0x1]
        %v419 = vsub.f32 %v418, 1.0
        %v420 = vmul.f32 %v419, 1e+09
        %v422 = vlaneseq
        %v423 = vshrl.u32 %v422, 7
        %v424 = vsub.s32 0, %v423
        %v425 = vrot.slane %v420, %v424
        %428 = vrot.lane.b32.xlu0 %v408, 96
        %v429 = vpop.permute.xlu0 %428
        %vm430 = vcmask 64512
        %v432 = vsel %vm430, %v399, 0
        %v434 = vsel %vm430, %v429, 0
        %436 = vmatprep.subr.mxu0 0.0
        %437 = vmatpush1.xpose.msra.mxu0 %v434
        %438 = vmatprep.subr.mxu0 0.0
        %439 = vmatpush1.xpose.msra.mxu0 0.0
        %440 = vmatprep.subr.mxu0 0.0
        %441 = vmatpush1.xpose.msra.mxu0 0.0
        %442 = vmatprep.subr.mxu0 0.0
        %443 = vmatpush1.xpose.msra.mxu0 0.0
        %444 = vmatprep.subr.mxu0 0.0
        %445 = vmatpush1.xpose.msra.mxu0 0.0
        %446 = vmatprep.subr.mxu0 0.0
        %447 = vmatpush1.xpose.msra.mxu0 0.0
        %448 = vmatprep.subr.mxu0 0.0
        %449 = vmatpush1.xpose.msra.mxu0 0.0
        %450 = vmatprep.subr.mxu0 0.0
        %451 = vmatpush1.xpose.msra.mxu0 0.0
        %452 = vmatprep.subr.mxu0 0.0
        %453 = vmatpush1.xpose.msra.mxu0 0.0
        %454 = vmatprep.subr.mxu0 0.0
        %455 = vmatpush1.xpose.msra.mxu0 0.0
        %456 = vmatprep.subr.mxu0 0.0
        %457 = vmatpush1.xpose.msra.mxu0 0.0
        %458 = vmatprep.subr.mxu0 0.0
        %459 = vmatpush1.xpose.msra.mxu0 0.0
        %460 = vmatprep.subr.mxu0 0.0
        %461 = vmatpush1.xpose.msra.mxu0 0.0
        %462 = vmatprep.subr.mxu0 0.0
        %463 = vmatpush1.xpose.msra.mxu0 0.0
        %464 = vmatprep.subr.mxu0 0.0
        %465 = vmatpush1.xpose.msra.mxu0 0.0
        %466 = vmatprep.subr.mxu0 0.0
        %467 = vmatpush1.xpose.msra.mxu0 0.0
        %468 = vmatprep.subr.mxu0 0.0
        %469 = vmatpush1.xpose.msra.mxu0 0.0
        %470 = vmatprep.subr.mxu0 0.0
        %471 = vmatpush1.xpose.msra.mxu0 0.0
        %472 = vmatprep.subr.mxu0 0.0
        %473 = vmatpush1.xpose.msra.mxu0 0.0
        %474 = vmatprep.subr.mxu0 0.0
        %475 = vmatpush1.xpose.msra.mxu0 0.0
        %476 = vmatprep.subr.mxu0 0.0
        %477 = vmatpush1.xpose.msra.mxu0 0.0
        %478 = vmatprep.subr.mxu0 0.0
        %479 = vmatpush1.xpose.msra.mxu0 0.0
        %480 = vmatprep.subr.mxu0 0.0
        %481 = vmatpush1.xpose.msra.mxu0 0.0
        %482 = vmatprep.subr.mxu0 0.0
        %483 = vmatpush1.xpose.msra.mxu0 0.0
        %484 = vmatprep.subr.mxu0 0.0
        %485 = vmatpush1.xpose.msra.mxu0 0.0
        %486 = vmatprep.subr.mxu0 0.0
        %487 = vmatpush1.xpose.msra.mxu0 0.0
        %488 = vmatprep.subr.mxu0 0.0
        %489 = vmatpush1.xpose.msra.mxu0 0.0
        %490 = vmatprep.subr.mxu0 0.0
        %491 = vmatpush1.xpose.msra.mxu0 0.0
        %492 = vmatprep.subr.mxu0 0.0
        %493 = vmatpush1.xpose.msra.mxu0 0.0
        %494 = vmatprep.subr.mxu0 0.0
        %495 = vmatpush1.xpose.msra.mxu0 0.0
        %496 = vmatprep.subr.mxu0 0.0
        %497 = vmatpush1.xpose.msra.mxu0 0.0
        %498 = vmatprep.subr.mxu0 0.0
        %499 = vmatpush1.xpose.msra.mxu0 0.0
        %500 = vmatprep.mubr.f32.mxu0 0.0
        %501 = vmatmul.mubr.f32.gmra.mrb[0].mxu0 %v432
        %v502 = vpop.f32.mrb[0].mxu0
        %v503 = vadd.f32 %v425, %v502
        %v504 = vpop.f32.mrb[0].mxu0
        %505 = vdwg.mxu0
        %v506 = vsel %vm430, %v503, -inf
        %507 = vmax.xlane.f32.xlu0 %v506
        %v508 = vpop.xlane.xlu0 %507
        %v509 = vsub.f32 %v503, %v508
        %v510 = vmul.f32 %v509, 1.442695
        %v511 = vpow.pop %v510
        %v512 = vsel %vm430, %v511, 0.0
        %513 = vadd.xlane.f32.xlu0 %v512
        %v514 = vpop.xlane.xlu0 %513
        %v515 = vrcp.pop %v514
        %v516 = vmul.f32 %v511, %v515
        %518 = vrot.lane.b32.xlu0 %v417, 64
        %v519 = vpop.permute.xlu0 %518
        %v522 = vsel %vm430, %v516, 0
        %524 = vmatprep.subr.mxu0 0.0
        %525 = vmatpush1.msra.mxu0 %v519
        %526 = vmatprep.subr.mxu0 0.0
        %527 = vmatpush1.msra.mxu0 0.0
        %528 = vmatprep.subr.mxu0 0.0
        %529 = vmatpush1.msra.mxu0 0.0
        %530 = vmatprep.subr.mxu0 0.0
        %531 = vmatpush1.msra.mxu0 0.0
        %532 = vmatprep.subr.mxu0 0.0
        %533 = vmatpush1.msra.mxu0 0.0
        %534 = vmatprep.subr.mxu0 0.0
        %535 = vmatpush1.msra.mxu0 0.0
        %536 = vmatprep.subr.mxu0 0.0
        %537 = vmatpush1.msra.mxu0 0.0
        %538 = vmatprep.subr.mxu0 0.0
        %539 = vmatpush1.msra.mxu0 0.0
        %540 = vmatprep.subr.mxu0 0.0
        %541 = vmatpush1.msra.mxu0 0.0
        %542 = vmatprep.subr.mxu0 0.0
        %543 = vmatpush1.msra.mxu0 0.0
        %544 = vmatprep.subr.mxu0 0.0
        %545 = vmatpush1.msra.mxu0 0.0
        %546 = vmatprep.subr.mxu0 0.0
        %547 = vmatpush1.msra.mxu0 0.0
        %548 = vmatprep.subr.mxu0 0.0
        %549 = vmatpush1.msra.mxu0 0.0
        %550 = vmatprep.subr.mxu0 0.0
        %551 = vmatpush1.msra.mxu0 0.0
        %552 = vmatprep.subr.mxu0 0.0
        %553 = vmatpush1.msra.mxu0 0.0
        %554 = vmatprep.subr.mxu0 0.0
        %555 = vmatpush1.msra.mxu0 0.0
        %556 = vmatprep.subr.mxu0 0.0
        %557 = vmatpush1.msra.mxu0 0.0
        %558 = vmatprep.subr.mxu0 0.0
        %559 = vmatpush1.msra.mxu0 0.0
        %560 = vmatprep.subr.mxu0 0.0
        %561 = vmatpush1.msra.mxu0 0.0
        %562 = vmatprep.subr.mxu0 0.0
        %563 = vmatpush1.msra.mxu0 0.0
        %564 = vmatprep.subr.mxu0 0.0
        %565 = vmatpush1.msra.mxu0 0.0
        %566 = vmatprep.subr.mxu0 0.0
        %567 = vmatpush1.msra.mxu0 0.0
        %568 = vmatprep.subr.mxu0 0.0
        %569 = vmatpush1.msra.mxu0 0.0
        %570 = vmatprep.subr.mxu0 0.0
        %571 = vmatpush1.msra.mxu0 0.0
        %572 = vmatprep.subr.mxu0 0.0
        %573 = vmatpush1.msra.mxu0 0.0
        %574 = vmatprep.subr.mxu0 0.0
        %575 = vmatpush1.msra.mxu0 0.0
        %576 = vmatprep.subr.mxu0 0.0
        %577 = vmatpush1.msra.mxu0 0.0
        %578 = vmatprep.subr.mxu0 0.0
        %579 = vmatpush1.msra.mxu0 0.0
        %580 = vmatprep.subr.mxu0 0.0
        %581 = vmatpush1.msra.mxu0 0.0
        %582 = vmatprep.subr.mxu0 0.0
        %583 = vmatpush1.msra.mxu0 0.0
        %584 = vmatprep.subr.mxu0 0.0
        %585 = vmatpush1.msra.mxu0 0.0
        %586 = vmatprep.subr.mxu0 0.0
        %587 = vmatpush1.msra.mxu0 0.0
        %588 = vmatprep.mubr.f32.mxu0 0.0
        %589 = vmatmul.mubr.f32.gmra.mrb[0].mxu0 %v522
        %v590 = vpop.f32.mrb[0].mxu0
        %v591 = vadd.f32 0.0, %v590
        %v592 = vpop.f32.mrb[0].mxu0
        %593 = vdwg.mxu0
        %594 = vrot.lane.b32.xlu0 %v399, 120
        %v595 = vpop.permute.xlu0 %594
        %596 = vrot.lane.b32.xlu0 %v408, 88
        %v597 = vpop.permute.xlu0 %596
        %v598 = vsel %vm430, %v595, 0
        %v600 = vsel %vm430, %v597, 0
        %602 = vmatprep.subr.mxu0 0.0
        %603 = vmatpush1.xpose.msra.mxu0 %v600
        %604 = vmatprep.subr.mxu0 0.0
        %605 = vmatpush1.xpose.msra.mxu0 0.0
        %606 = vmatprep.subr.mxu0 0.0
        %607 = vmatpush1.xpose.msra.mxu0 0.0
        %608 = vmatprep.subr.mxu0 0.0
        %609 = vmatpush1.xpose.msra.mxu0 0.0
        %610 = vmatprep.subr.mxu0 0.0
        %611 = vmatpush1.xpose.msra.mxu0 0.0
        %612 = vmatprep.subr.mxu0 0.0
        %613 = vmatpush1.xpose.msra.mxu0 0.0
        %614 = vmatprep.subr.mxu0 0.0
        %615 = vmatpush1.xpose.msra.mxu0 0.0
        %616 = vmatprep.subr.mxu0 0.0
        %617 = vmatpush1.xpose.msra.mxu0 0.0
        %618 = vmatprep.subr.mxu0 0.0
        %619 = vmatpush1.xpose.msra.mxu0 0.0
        %620 = vmatprep.subr.mxu0 0.0
        %621 = vmatpush1.xpose.msra.mxu0 0.0
        %622 = vmatprep.subr.mxu0 0.0
        %623 = vmatpush1.xpose.msra.mxu0 0.0
        %624 = vmatprep.subr.mxu0 0.0
        %625 = vmatpush1.xpose.msra.mxu0 0.0
        %626 = vmatprep.subr.mxu0 0.0
        %627 = vmatpush1.xpose.msra.mxu0 0.0
        %628 = vmatprep.subr.mxu0 0.0
        %629 = vmatpush1.xpose.msra.mxu0 0.0
        %630 = vmatprep.subr.mxu0 0.0
        %631 = vmatpush1.xpose.msra.mxu0 0.0
        %632 = vmatprep.subr.mxu0 0.0
        %633 = vmatpush1.xpose.msra.mxu0 0.0
        %634 = vmatprep.subr.mxu0 0.0
        %635 = vmatpush1.xpose.msra.mxu0 0.0
        %636 = vmatprep.subr.mxu0 0.0
        %637 = vmatpush1.xpose.msra.mxu0 0.0
        %638 = vmatprep.subr.mxu0 0.0
        %639 = vmatpush1.xpose.msra.mxu0 0.0
        %640 = vmatprep.subr.mxu0 0.0
        %641 = vmatpush1.xpose.msra.mxu0 0.0
        %642 = vmatprep.subr.mxu0 0.0
        %643 = vmatpush1.xpose.msra.mxu0 0.0
        %644 = vmatprep.subr.mxu0 0.0
        %645 = vmatpush1.xpose.msra.mxu0 0.0
        %646 = vmatprep.subr.mxu0 0.0
        %647 = vmatpush1.xpose.msra.mxu0 0.0
        %648 = vmatprep.subr.mxu0 0.0
        %649 = vmatpush1.xpose.msra.mxu0 0.0
        %650 = vmatprep.subr.mxu0 0.0
        %651 = vmatpush1.xpose.msra.mxu0 0.0
        %652 = vmatprep.subr.mxu0 0.0
        %653 = vmatpush1.xpose.msra.mxu0 0.0
        %654 = vmatprep.subr.mxu0 0.0
        %655 = vmatpush1.xpose.msra.mxu0 0.0
        %656 = vmatprep.subr.mxu0 0.0
        %657 = vmatpush1.xpose.msra.mxu0 0.0
        %658 = vmatprep.subr.mxu0 0.0
        %659 = vmatpush1.xpose.msra.mxu0 0.0
        %660 = vmatprep.subr.mxu0 0.0
        %661 = vmatpush1.xpose.msra.mxu0 0.0
        %662 = vmatprep.subr.mxu0 0.0
        %663 = vmatpush1.xpose.msra.mxu0 0.0
        %664 = vmatprep.subr.mxu0 0.0
        %665 = vmatpush1.xpose.msra.mxu0 0.0
        %666 = vmatprep.mubr.f32.mxu0 0.0
        %667 = vmatmul.mubr.f32.gmra.mrb[0].mxu0 %v598
        %v668 = vpop.f32.mrb[0].mxu0
        %v669 = vadd.f32 %v425, %v668
        %v670 = vpop.f32.mrb[0].mxu0
        %671 = vdwg.mxu0
        %v672 = vsel %vm430, %v669, -inf
        %673 = vmax.xlane.f32.xlu0 %v672
        %v674 = vpop.xlane.xlu0 %673
        %v675 = vsub.f32 %v669, %v674
        %v676 = vmul.f32 %v675, 1.442695
        %v677 = vpow.pop %v676
        %v678 = vsel %vm430, %v677, 0.0
        %679 = vadd.xlane.f32.xlu0 %v678
        %v680 = vpop.xlane.xlu0 %679
        %v681 = vrcp.pop %v680
        %v682 = vmul.f32 %v677, %v681
        %683 = vrot.lane.b32.xlu0 %v417, 56
        %v684 = vpop.permute.xlu0 %683
        %v687 = vsel %vm430, %v682, 0
        %689 = vmatprep.subr.mxu0 0.0
        %690 = vmatpush1.msra.mxu0 %v684
        %691 = vmatprep.subr.mxu0 0.0
        %692 = vmatpush1.msra.mxu0 0.0
        %693 = vmatprep.subr.mxu0 0.0
        %694 = vmatpush1.msra.mxu0 0.0
        %695 = vmatprep.subr.mxu0 0.0
        %696 = vmatpush1.msra.mxu0 0.0
        %697 = vmatprep.subr.mxu0 0.0
        %698 = vmatpush1.msra.mxu0 0.0
        %699 = vmatprep.subr.mxu0 0.0
        %700 = vmatpush1.msra.mxu0 0.0
        %701 = vmatprep.subr.mxu0 0.0
        %702 = vmatpush1.msra.mxu0 0.0
        %703 = vmatprep.subr.mxu0 0.0
        %704 = vmatpush1.msra.mxu0 0.0
        %705 = vmatprep.subr.mxu0 0.0
        %706 = vmatpush1.msra.mxu0 0.0
        %707 = vmatprep.subr.mxu0 0.0
        %708 = vmatpush1.msra.mxu0 0.0
        %709 = vmatprep.subr.mxu0 0.0
        %710 = vmatpush1.msra.mxu0 0.0
        %711 = vmatprep.subr.mxu0 0.0
        %712 = vmatpush1.msra.mxu0 0.0
        %713 = vmatprep.subr.mxu0 0.0
        %714 = vmatpush1.msra.mxu0 0.0
        %715 = vmatprep.subr.mxu0 0.0
        %716 = vmatpush1.msra.mxu0 0.0
        %717 = vmatprep.subr.mxu0 0.0
        %718 = vmatpush1.msra.mxu0 0.0
        %719 = vmatprep.subr.mxu0 0.0
        %720 = vmatpush1.msra.mxu0 0.0
        %721 = vmatprep.subr.mxu0 0.0
        %722 = vmatpush1.msra.mxu0 0.0
        %723 = vmatprep.subr.mxu0 0.0
        %724 = vmatpush1.msra.mxu0 0.0
        %725 = vmatprep.subr.mxu0 0.0
        %726 = vmatpush1.msra.mxu0 0.0
        %727 = vmatprep.subr.mxu0 0.0
        %728 = vmatpush1.msra.mxu0 0.0
        %729 = vmatprep.subr.mxu0 0.0
        %730 = vmatpush1.msra.mxu0 0.0
        %731 = vmatprep.subr.mxu0 0.0
        %732 = vmatpush1.msra.mxu0 0.0
        %733 = vmatprep.subr.mxu0 0.0
        %734 = vmatpush1.msra.mxu0 0.0
        %735 = vmatprep.subr.mxu0 0.0
        %736 = vmatpush1.msra.mxu0 0.0
        %737 = vmatprep.subr.mxu0 0.0
        %738 = vmatpush1.msra.mxu0 0.0
        %739 = vmatprep.subr.mxu0 0.0
        %740 = vmatpush1.msra.mxu0 0.0
        %741 = vmatprep.subr.mxu0 0.0
        %742 = vmatpush1.msra.mxu0 0.0
        %743 = vmatprep.subr.mxu0 0.0
        %744 = vmatpush1.msra.mxu0 0.0
        %745 = vmatprep.subr.mxu0 0.0
        %746 = vmatpush1.msra.mxu0 0.0
        %747 = vmatprep.subr.mxu0 0.0
        %748 = vmatpush1.msra.mxu0 0.0
        %749 = vmatprep.subr.mxu0 0.0
        %750 = vmatpush1.msra.mxu0 0.0
        %751 = vmatprep.subr.mxu0 0.0
        %752 = vmatpush1.msra.mxu0 0.0
        %753 = vmatprep.mubr.f32.mxu0 0.0
        %754 = vmatmul.mubr.f32.gmra.mrb[0].mxu0 %v687
        %v755 = vpop.f32.mrb[0].mxu0
        %v756 = vadd.f32 0.0, %v755
        %v757 = vpop.f32.mrb[0].mxu0
        %758 = vdwg.mxu0
        %759 = vrot.lane.b32.xlu0 %v399, 112
        %v760 = vpop.permute.xlu0 %759
        %761 = vrot.lane.b32.xlu0 %v408, 80
        %v762 = vpop.permute.xlu0 %761
        %v763 = vsel %vm430, %v760, 0
        %v765 = vsel %vm430, %v762, 0
        %767 = vmatprep.subr.mxu0 0.0
        %768 = vmatpush1.xpose.msra.mxu0 %v765
        %769 = vmatprep.subr.mxu0 0.0
        %770 = vmatpush1.xpose.msra.mxu0 0.0
        %771 = vmatprep.subr.mxu0 0.0
        %772 = vmatpush1.xpose.msra.mxu0 0.0
        %773 = vmatprep.subr.mxu0 0.0
        %774 = vmatpush1.xpose.msra.mxu0 0.0
        %775 = vmatprep.subr.mxu0 0.0
        %776 = vmatpush1.xpose.msra.mxu0 0.0
        %777 = vmatprep.subr.mxu0 0.0
        %778 = vmatpush1.xpose.msra.mxu0 0.0
        %779 = vmatprep.subr.mxu0 0.0
        %780 = vmatpush1.xpose.msra.mxu0 0.0
        %781 = vmatprep.subr.mxu0 0.0
        %782 = vmatpush1.xpose.msra.mxu0 0.0
        %783 = vmatprep.subr.mxu0 0.0
        %784 = vmatpush1.xpose.msra.mxu0 0.0
        %785 = vmatprep.subr.mxu0 0.0
        %786 = vmatpush1.xpose.msra.mxu0 0.0
        %787 = vmatprep.subr.mxu0 0.0
        %788 = vmatpush1.xpose.msra.mxu0 0.0
        %789 = vmatprep.subr.mxu0 0.0
        %790 = vmatpush1.xpose.msra.mxu0 0.0
        %791 = vmatprep.subr.mxu0 0.0
        %792 = vmatpush1.xpose.msra.mxu0 0.0
        %793 = vmatprep.subr.mxu0 0.0
        %794 = vmatpush1.xpose.msra.mxu0 0.0
        %795 = vmatprep.subr.mxu0 0.0
        %796 = vmatpush1.xpose.msra.mxu0 0.0
        %797 = vmatprep.subr.mxu0 0.0
        %798 = vmatpush1.xpose.msra.mxu0 0.0
        %799 = vmatprep.subr.mxu0 0.0
        %800 = vmatpush1.xpose.msra.mxu0 0.0
        %801 = vmatprep.subr.mxu0 0.0
        %802 = vmatpush1.xpose.msra.mxu0 0.0
        %803 = vmatprep.subr.mxu0 0.0
        %804 = vmatpush1.xpose.msra.mxu0 0.0
        %805 = vmatprep.subr.mxu0 0.0
        %806 = vmatpush1.xpose.msra.mxu0 0.0
        %807 = vmatprep.subr.mxu0 0.0
        %808 = vmatpush1.xpose.msra.mxu0 0.0
        %809 = vmatprep.subr.mxu0 0.0
        %810 = vmatpush1.xpose.msra.mxu0 0.0
        %811 = vmatprep.subr.mxu0 0.0
        %812 = vmatpush1.xpose.msra.mxu0 0.0
        %813 = vmatprep.subr.mxu0 0.0
        %814 = vmatpush1.xpose.msra.mxu0 0.0
        %815 = vmatprep.subr.mxu0 0.0
        %816 = vmatpush1.xpose.msra.mxu0 0.0
        %817 = vmatprep.subr.mxu0 0.0
        %818 = vmatpush1.xpose.msra.mxu0 0.0
        %819 = vmatprep.subr.mxu0 0.0
        %820 = vmatpush1.xpose.msra.mxu0 0.0
        %821 = vmatprep.subr.mxu0 0.0
        %822 = vmatpush1.xpose.msra.mxu0 0.0
        %823 = vmatprep.subr.mxu0 0.0
        %824 = vmatpush1.xpose.msra.mxu0 0.0
        %825 = vmatprep.subr.mxu0 0.0
        %826 = vmatpush1.xpose.msra.mxu0 0.0
        %827 = vmatprep.subr.mxu0 0.0
        %828 = vmatpush1.xpose.msra.mxu0 0.0
        %829 = vmatprep.subr.mxu0 0.0
        %830 = vmatpush1.xpose.msra.mxu0 0.0
        %831 = vmatprep.mubr.f32.mxu0 0.0
        %832 = vmatmul.mubr.f32.gmra.mrb[0].mxu0 %v763
        %v833 = vpop.f32.mrb[0].mxu0
        %v834 = vadd.f32 %v425, %v833
        %v835 = vpop.f32.mrb[0].mxu0
        %836 = vdwg.mxu0
        %v837 = vsel %vm430, %v834, -inf
        %838 = vmax.xlane.f32.xlu0 %v837
        %v839 = vpop.xlane.xlu0 %838
        %v840 = vsub.f32 %v834, %v839
        %v841 = vmul.f32 %v840, 1.442695
        %v842 = vpow.pop %v841
        %v843 = vsel %vm430, %v842, 0.0
        %844 = vadd.xlane.f32.xlu0 %v843
        %v845 = vpop.xlane.xlu0 %844
        %v846 = vrcp.pop %v845
        %v847 = vmul.f32 %v842, %v846
        %848 = vrot.lane.b32.xlu0 %v417, 48
        %v849 = vpop.permute.xlu0 %848
        %v852 = vsel %vm430, %v847, 0
        %854 = vmatprep.subr.mxu0 0.0
        %855 = vmatpush1.msra.mxu0 %v849
        %856 = vmatprep.subr.mxu0 0.0
        %857 = vmatpush1.msra.mxu0 0.0
        %858 = vmatprep.subr.mxu0 0.0
        %859 = vmatpush1.msra.mxu0 0.0
        %860 = vmatprep.subr.mxu0 0.0
        %861 = vmatpush1.msra.mxu0 0.0
        %862 = vmatprep.subr.mxu0 0.0
        %863 = vmatpush1.msra.mxu0 0.0
        %864 = vmatprep.subr.mxu0 0.0
        %865 = vmatpush1.msra.mxu0 0.0
        %866 = vmatprep.subr.mxu0 0.0
        %867 = vmatpush1.msra.mxu0 0.0
        %868 = vmatprep.subr.mxu0 0.0
        %869 = vmatpush1.msra.mxu0 0.0
        %870 = vmatprep.subr.mxu0 0.0
        %871 = vmatpush1.msra.mxu0 0.0
        %872 = vmatprep.subr.mxu0 0.0
        %873 = vmatpush1.msra.mxu0 0.0
        %874 = vmatprep.subr.mxu0 0.0
        %875 = vmatpush1.msra.mxu0 0.0
        %876 = vmatprep.subr.mxu0 0.0
        %877 = vmatpush1.msra.mxu0 0.0
        %878 = vmatprep.subr.mxu0 0.0
        %879 = vmatpush1.msra.mxu0 0.0
        %880 = vmatprep.subr.mxu0 0.0
        %881 = vmatpush1.msra.mxu0 0.0
        %882 = vmatprep.subr.mxu0 0.0
        %883 = vmatpush1.msra.mxu0 0.0
        %884 = vmatprep.subr.mxu0 0.0
        %885 = vmatpush1.msra.mxu0 0.0
        %886 = vmatprep.subr.mxu0 0.0
        %887 = vmatpush1.msra.mxu0 0.0
        %888 = vmatprep.subr.mxu0 0.0
        %889 = vmatpush1.msra.mxu0 0.0
        %890 = vmatprep.subr.mxu0 0.0
        %891 = vmatpush1.msra.mxu0 0.0
        %892 = vmatprep.subr.mxu0 0.0
        %893 = vmatpush1.msra.mxu0 0.0
        %894 = vmatprep.subr.mxu0 0.0
        %895 = vmatpush1.msra.mxu0 0.0
        %896 = vmatprep.subr.mxu0 0.0
        %897 = vmatpush1.msra.mxu0 0.0
        %898 = vmatprep.subr.mxu0 0.0
        %899 = vmatpush1.msra.mxu0 0.0
        %900 = vmatprep.subr.mxu0 0.0
        %901 = vmatpush1.msra.mxu0 0.0
        %902 = vmatprep.subr.mxu0 0.0
        %903 = vmatpush1.msra.mxu0 0.0
        %904 = vmatprep.subr.mxu0 0.0
        %905 = vmatpush1.msra.mxu0 0.0
        %906 = vmatprep.subr.mxu0 0.0
        %907 = vmatpush1.msra.mxu0 0.0
        %908 = vmatprep.subr.mxu0 0.0
        %909 = vmatpush1.msra.mxu0 0.0
        %910 = vmatprep.subr.mxu0 0.0
        %911 = vmatpush1.msra.mxu0 0.0
        %912 = vmatprep.subr.mxu0 0.0
        %913 = vmatpush1.msra.mxu0 0.0
        %914 = vmatprep.subr.mxu0 0.0
        %915 = vmatpush1.msra.mxu0 0.0
        %916 = vmatprep.subr.mxu0 0.0
        %917 = vmatpush1.msra.mxu0 0.0
        %918 = vmatprep.mubr.f32.mxu0 0.0
        %919 = vmatmul.mubr.f32.gmra.mrb[0].mxu0 %v852
        %v920 = vpop.f32.mrb[0].mxu0
        %v921 = vadd.f32 0.0, %v920
        %v922 = vpop.f32.mrb[0].mxu0
        %923 = vdwg.mxu0
        %924 = vrot.lane.b32.xlu0 %v399, 104
        %v925 = vpop.permute.xlu0 %924
        %926 = vrot.lane.b32.xlu0 %v408, 72
        %v927 = vpop.permute.xlu0 %926
        %v928 = vsel %vm430, %v925, 0
        %v930 = vsel %vm430, %v927, 0
        %932 = vmatprep.subr.mxu0 0.0
        %933 = vmatpush1.xpose.msra.mxu0 %v930
        %934 = vmatprep.subr.mxu0 0.0
        %935 = vmatpush1.xpose.msra.mxu0 0.0
        %936 = vmatprep.subr.mxu0 0.0
        %937 = vmatpush1.xpose.msra.mxu0 0.0
        %938 = vmatprep.subr.mxu0 0.0
        %939 = vmatpush1.xpose.msra.mxu0 0.0
        %940 = vmatprep.subr.mxu0 0.0
        %941 = vmatpush1.xpose.msra.mxu0 0.0
        %942 = vmatprep.subr.mxu0 0.0
        %943 = vmatpush1.xpose.msra.mxu0 0.0
        %944 = vmatprep.subr.mxu0 0.0
        %945 = vmatpush1.xpose.msra.mxu0 0.0
        %946 = vmatprep.subr.mxu0 0.0
        %947 = vmatpush1.xpose.msra.mxu0 0.0
        %948 = vmatprep.subr.mxu0 0.0
        %949 = vmatpush1.xpose.msra.mxu0 0.0
        %950 = vmatprep.subr.mxu0 0.0
        %951 = vmatpush1.xpose.msra.mxu0 0.0
        %952 = vmatprep.subr.mxu0 0.0
        %953 = vmatpush1.xpose.msra.mxu0 0.0
        %954 = vmatprep.subr.mxu0 0.0
        %955 = vmatpush1.xpose.msra.mxu0 0.0
        %956 = vmatprep.subr.mxu0 0.0
        %957 = vmatpush1.xpose.msra.mxu0 0.0
        %958 = vmatprep.subr.mxu0 0.0
        %959 = vmatpush1.xpose.msra.mxu0 0.0
        %960 = vmatprep.subr.mxu0 0.0
        %961 = vmatpush1.xpose.msra.mxu0 0.0
        %962 = vmatprep.subr.mxu0 0.0
        %963 = vmatpush1.xpose.msra.mxu0 0.0
        %964 = vmatprep.subr.mxu0 0.0
        %965 = vmatpush1.xpose.msra.mxu0 0.0
        %966 = vmatprep.subr.mxu0 0.0
        %967 = vmatpush1.xpose.msra.mxu0 0.0
        %968 = vmatprep.subr.mxu0 0.0
        %969 = vmatpush1.xpose.msra.mxu0 0.0
        %970 = vmatprep.subr.mxu0 0.0
        %971 = vmatpush1.xpose.msra.mxu0 0.0
        %972 = vmatprep.subr.mxu0 0.0
        %973 = vmatpush1.xpose.msra.mxu0 0.0
        %974 = vmatprep.subr.mxu0 0.0
        %975 = vmatpush1.xpose.msra.mxu0 0.0
        %976 = vmatprep.subr.mxu0 0.0
        %977 = vmatpush1.xpose.msra.mxu0 0.0
        %978 = vmatprep.subr.mxu0 0.0
        %979 = vmatpush1.xpose.msra.mxu0 0.0
        %980 = vmatprep.subr.mxu0 0.0
        %981 = vmatpush1.xpose.msra.mxu0 0.0
        %982 = vmatprep.subr.mxu0 0.0
        %983 = vmatpush1.xpose.msra.mxu0 0.0
        %984 = vmatprep.subr.mxu0 0.0
        %985 = vmatpush1.xpose.msra.mxu0 0.0
        %986 = vmatprep.subr.mxu0 0.0
        %987 = vmatpush1.xpose.msra.mxu0 0.0
        %988 = vmatprep.subr.mxu0 0.0
        %989 = vmatpush1.xpose.msra.mxu0 0.0
        %990 = vmatprep.subr.mxu0 0.0
        %991 = vmatpush1.xpose.msra.mxu0 0.0
        %992 = vmatprep.subr.mxu0 0.0
        %993 = vmatpush1.xpose.msra.mxu0 0.0
        %994 = vmatprep.subr.mxu0 0.0
        %995 = vmatpush1.xpose.msra.mxu0 0.0
        %996 = vmatprep.mubr.f32.mxu0 0.0
        %997 = vmatmul.mubr.f32.gmra.mrb[0].mxu0 %v928
        %v998 = vpop.f32.mrb[0].mxu0
        %v999 = vadd.f32 %v425, %v998
        %v1000 = vpop.f32.mrb[0].mxu0
        %1001 = vdwg.mxu0
        %v1002 = vsel %vm430, %v999, -inf
        %1003 = vmax.xlane.f32.xlu0 %v1002
        %v1004 = vpop.xlane.xlu0 %1003
        %v1005 = vsub.f32 %v999, %v1004
        %v1006 = vmul.f32 %v1005, 1.442695
        %v1007 = vpow.pop %v1006
        %v1008 = vsel %vm430, %v1007, 0.0
        %1009 = vadd.xlane.f32.xlu0 %v1008
        %v1010 = vpop.xlane.xlu0 %1009
        %v1011 = vrcp.pop %v1010
        %v1012 = vmul.f32 %v1007, %v1011
        %1013 = vrot.lane.b32.xlu0 %v417, 40
        %v1014 = vpop.permute.xlu0 %1013
        %v1017 = vsel %vm430, %v1012, 0
        %1019 = vmatprep.subr.mxu0 0.0
        %1020 = vmatpush1.msra.mxu0 %v1014
        %1021 = vmatprep.subr.mxu0 0.0
        %1022 = vmatpush1.msra.mxu0 0.0
        %1023 = vmatprep.subr.mxu0 0.0
        %1024 = vmatpush1.msra.mxu0 0.0
        %1025 = vmatprep.subr.mxu0 0.0
        %1026 = vmatpush1.msra.mxu0 0.0
        %1027 = vmatprep.subr.mxu0 0.0
        %1028 = vmatpush1.msra.mxu0 0.0
        %1029 = vmatprep.subr.mxu0 0.0
        %1030 = vmatpush1.msra.mxu0 0.0
        %1031 = vmatprep.subr.mxu0 0.0
        %1032 = vmatpush1.msra.mxu0 0.0
        %1033 = vmatprep.subr.mxu0 0.0
        %1034 = vmatpush1.msra.mxu0 0.0
        %1035 = vmatprep.subr.mxu0 0.0
        %1036 = vmatpush1.msra.mxu0 0.0
        %1037 = vmatprep.subr.mxu0 0.0
        %1038 = vmatpush1.msra.mxu0 0.0
        %1039 = vmatprep.subr.mxu0 0.0
        %1040 = vmatpush1.msra.mxu0 0.0
        %1041 = vmatprep.subr.mxu0 0.0
        %1042 = vmatpush1.msra.mxu0 0.0
        %1043 = vmatprep.subr.mxu0 0.0
        %1044 = vmatpush1.msra.mxu0 0.0
        %1045 = vmatprep.subr.mxu0 0.0
        %1046 = vmatpush1.msra.mxu0 0.0
        %1047 = vmatprep.subr.mxu0 0.0
        %1048 = vmatpush1.msra.mxu0 0.0
        %1049 = vmatprep.subr.mxu0 0.0
        %1050 = vmatpush1.msra.mxu0 0.0
        %1051 = vmatprep.subr.mxu0 0.0
        %1052 = vmatpush1.msra.mxu0 0.0
        %1053 = vmatprep.subr.mxu0 0.0
        %1054 = vmatpush1.msra.mxu0 0.0
        %1055 = vmatprep.subr.mxu0 0.0
        %1056 = vmatpush1.msra.mxu0 0.0
        %1057 = vmatprep.subr.mxu0 0.0
        %1058 = vmatpush1.msra.mxu0 0.0
        %1059 = vmatprep.subr.mxu0 0.0
        %1060 = vmatpush1.msra.mxu0 0.0
        %1061 = vmatprep.subr.mxu0 0.0
        %1062 = vmatpush1.msra.mxu0 0.0
        %1063 = vmatprep.subr.mxu0 0.0
        %1064 = vmatpush1.msra.mxu0 0.0
        %1065 = vmatprep.subr.mxu0 0.0
        %1066 = vmatpush1.msra.mxu0 0.0
        %1067 = vmatprep.subr.mxu0 0.0
        %1068 = vmatpush1.msra.mxu0 0.0
        %1069 = vmatprep.subr.mxu0 0.0
        %1070 = vmatpush1.msra.mxu0 0.0
        %1071 = vmatprep.subr.mxu0 0.0
        %1072 = vmatpush1.msra.mxu0 0.0
        %1073 = vmatprep.subr.mxu0 0.0
        %1074 = vmatpush1.msra.mxu0 0.0
        %1075 = vmatprep.subr.mxu0 0.0
        %1076 = vmatpush1.msra.mxu0 0.0
        %1077 = vmatprep.subr.mxu0 0.0
        %1078 = vmatpush1.msra.mxu0 0.0
        %1079 = vmatprep.subr.mxu0 0.0
        %1080 = vmatpush1.msra.mxu0 0.0
        %1081 = vmatprep.subr.mxu0 0.0
        %1082 = vmatpush1.msra.mxu0 0.0
        %1083 = vmatprep.mubr.f32.mxu0 0.0
        %1084 = vmatmul.mubr.f32.gmra.mrb[0].mxu0 %v1017
        %v1085 = vpop.f32.mrb[0].mxu0
        %v1086 = vadd.f32 0.0, %v1085
        %v1087 = vpop.f32.mrb[0].mxu0
        %1088 = vdwg.mxu0
        %1090 = vrot.lane.b32.xlu0 %v756, 8
        %v1091 = vpop.permute.xlu0 %1090
        %1094 = vrot.lane.b32.xlu0 %v921, 16
        %v1095 = vpop.permute.xlu0 %1094
        %1098 = vrot.lane.b32.xlu0 %v1086, 24
        %v1099 = vpop.permute.xlu0 %1098
        %v1101 = vsel %vm430, %v591, %v1091
        %vm1102 = vcmask 130048
        %v1103 = vsel %vm1102, %v1101, %v1095
        %vm1104 = vcmask 195584
        %v1105 = vsel %vm1104, %v1103, %v1099
        %v1106 = vld [vmem:[#allocation7] sm:$0xff]
        %v1107 = vld [vmem:[#allocation7 + $0x8] sm:$0xff]
        %v1108 = vld [vmem:[#allocation7 + $0x10] sm:$0xff]
        %v1109 = vld [vmem:[#allocation7 + $0x18] sm:$0xff]
        %s1110 = scalar_lea.vmem [#allocation7], 32
        %v1111 = vld [vmem:[%s1110] sm:$0xff]
        %v1112 = vld [vmem:[%s1110 + $0x8] sm:$0xff]
        %v1113 = vld [vmem:[%s1110 + $0x10] sm:$0xff]
        %v1114 = vld [vmem:[%s1110 + $0x18] sm:$0xff]
        %1115 = vmatprep.subr.mxu0 0.0
        %1116 = vmatpush1.msra.mxu0 %v1111
        %1117 = vmatprep.subr.mxu0 0.0
        %1118 = vmatpush1.msra.mxu0 %v1112
        %1119 = vmatprep.subr.mxu0 0.0
        %1120 = vmatpush1.msra.mxu0 %v1113
        %1121 = vmatprep.subr.mxu0 0.0
        %1122 = vmatpush1.msra.mxu0 %v1114
        %1123 = vmatprep.subr.mxu0 0.0
        %1124 = vmatpush1.msra.mxu0 0.0
        %1125 = vmatprep.subr.mxu0 0.0
        %1126 = vmatpush1.msra.mxu0 0.0
        %1127 = vmatprep.subr.mxu0 0.0
        %1128 = vmatpush1.msra.mxu0 0.0
        %1129 = vmatprep.subr.mxu0 0.0
        %1130 = vmatpush1.msra.mxu0 0.0
        %1131 = vmatprep.subr.mxu0 0.0
        %1132 = vmatpush1.msra.mxu0 0.0
        %1133 = vmatprep.subr.mxu0 0.0
        %1134 = vmatpush1.msra.mxu0 0.0
        %1135 = vmatprep.subr.mxu0 0.0
        %1136 = vmatpush1.msra.mxu0 0.0
        %1137 = vmatprep.subr.mxu0 0.0
        %1138 = vmatpush1.msra.mxu0 0.0
        %1139 = vmatprep.subr.mxu0 0.0
        %1140 = vmatpush1.msra.mxu0 0.0
        %1141 = vmatprep.subr.mxu0 0.0
        %1142 = vmatpush1.msra.mxu0 0.0
        %1143 = vmatprep.subr.mxu0 0.0
        %1144 = vmatpush1.msra.mxu0 0.0
        %1145 = vmatprep.subr.mxu0 0.0
        %1146 = vmatpush1.msra.mxu0 0.0
        %1147 = vmatprep.subr.mxu0 0.0
        %1148 = vmatpush1.msra.mxu0 0.0
        %1149 = vmatprep.subr.mxu0 0.0
        %1150 = vmatpush1.msra.mxu0 0.0
        %1151 = vmatprep.subr.mxu0 0.0
        %1152 = vmatpush1.msra.mxu0 0.0
        %1153 = vmatprep.subr.mxu0 0.0
        %1154 = vmatpush1.msra.mxu0 0.0
        %1155 = vmatprep.subr.mxu0 0.0
        %1156 = vmatpush1.msra.mxu0 0.0
        %1157 = vmatprep.subr.mxu0 0.0
        %1158 = vmatpush1.msra.mxu0 0.0
        %1159 = vmatprep.subr.mxu0 0.0
        %1160 = vmatpush1.msra.mxu0 0.0
        %1161 = vmatprep.subr.mxu0 0.0
        %1162 = vmatpush1.msra.mxu0 0.0
        %1163 = vmatprep.subr.mxu0 0.0
        %1164 = vmatpush1.msra.mxu0 0.0
        %1165 = vmatprep.subr.mxu0 0.0
        %1166 = vmatpush1.msra.mxu0 0.0
        %1167 = vmatprep.subr.mxu0 0.0
        %1168 = vmatpush1.msra.mxu0 0.0
        %1169 = vmatprep.subr.mxu0 0.0
        %1170 = vmatpush1.msra.mxu0 0.0
        %1171 = vmatprep.subr.mxu0 0.0
        %1172 = vmatpush1.msra.mxu0 0.0
        %1173 = vmatprep.subr.mxu0 0.0
        %1174 = vmatpush1.msra.mxu0 0.0
        %1175 = vmatprep.subr.mxu0 0.0
        %1176 = vmatpush1.msra.mxu0 0.0
        %1177 = vmatprep.subr.mxu0 0.0
        %1178 = vmatpush1.msra.mxu0 0.0
        %1179 = vmatprep.mubr.f32.mxu0 0.0
        %1180 = vmatmul.mubr.f32.gmra.mrb[0].mxu0 %v323
        %v1181 = vpop.f32.mrb[0].mxu0
        %v1182 = vadd.f32 0.0, %v1181
        %v1183 = vpop.f32.mrb[0].mxu0
        %1184 = vdwg.mxu0
        %v1186 = vsel %vm285, %v1105, 0
        %1188 = vmatprep.subr.mxu0 0.0
        %1189 = vmatpush1.msra.mxu0 %v1106
        %1190 = vmatprep.subr.mxu0 0.0
        %1191 = vmatpush1.msra.mxu0 %v1107
        %1192 = vmatprep.subr.mxu0 0.0
        %1193 = vmatpush1.msra.mxu0 %v1108
        %1194 = vmatprep.subr.mxu0 0.0
        %1195 = vmatpush1.msra.mxu0 %v1109
        %1196 = vmatprep.subr.mxu0 0.0
        %1197 = vmatpush1.msra.mxu0 0.0
        %1198 = vmatprep.subr.mxu0 0.0
        %1199 = vmatpush1.msra.mxu0 0.0
        %1200 = vmatprep.subr.mxu0 0.0
        %1201 = vmatpush1.msra.mxu0 0.0
        %1202 = vmatprep.subr.mxu0 0.0
        %1203 = vmatpush1.msra.mxu0 0.0
        %1204 = vmatprep.subr.mxu0 0.0
        %1205 = vmatpush1.msra.mxu0 0.0
        %1206 = vmatprep.subr.mxu0 0.0
        %1207 = vmatpush1.msra.mxu0 0.0
        %1208 = vmatprep.subr.mxu0 0.0
        %1209 = vmatpush1.msra.mxu0 0.0
        %1210 = vmatprep.subr.mxu0 0.0
        %1211 = vmatpush1.msra.mxu0 0.0
        %1212 = vmatprep.subr.mxu0 0.0
        %1213 = vmatpush1.msra.mxu0 0.0
        %1214 = vmatprep.subr.mxu0 0.0
        %1215 = vmatpush1.msra.mxu0 0.0
        %1216 = vmatprep.subr.mxu0 0.0
        %1217 = vmatpush1.msra.mxu0 0.0
        %1218 = vmatprep.subr.mxu0 0.0
        %1219 = vmatpush1.msra.mxu0 0.0
        %1220 = vmatprep.subr.mxu0 0.0
        %1221 = vmatpush1.msra.mxu0 0.0
        %1222 = vmatprep.subr.mxu0 0.0
        %1223 = vmatpush1.msra.mxu0 0.0
        %1224 = vmatprep.subr.mxu0 0.0
        %1225 = vmatpush1.msra.mxu0 0.0
        %1226 = vmatprep.subr.mxu0 0.0
        %1227 = vmatpush1.msra.mxu0 0.0
        %1228 = vmatprep.subr.mxu0 0.0
        %1229 = vmatpush1.msra.mxu0 0.0
        %1230 = vmatprep.subr.mxu0 0.0
        %1231 = vmatpush1.msra.mxu0 0.0
        %1232 = vmatprep.subr.mxu0 0.0
        %1233 = vmatpush1.msra.mxu0 0.0
        %1234 = vmatprep.subr.mxu0 0.0
        %1235 = vmatpush1.msra.mxu0 0.0
        %1236 = vmatprep.subr.mxu0 0.0
        %1237 = vmatpush1.msra.mxu0 0.0
        %1238 = vmatprep.subr.mxu0 0.0
        %1239 = vmatpush1.msra.mxu0 0.0
        %1240 = vmatprep.subr.mxu0 0.0
        %1241 = vmatpush1.msra.mxu0 0.0
        %1242 = vmatprep.subr.mxu0 0.0
        %1243 = vmatpush1.msra.mxu0 0.0
        %1244 = vmatprep.subr.mxu0 0.0
        %1245 = vmatpush1.msra.mxu0 0.0
        %1246 = vmatprep.subr.mxu0 0.0
        %1247 = vmatpush1.msra.mxu0 0.0
        %1248 = vmatprep.subr.mxu0 0.0
        %1249 = vmatpush1.msra.mxu0 0.0
        %1250 = vmatprep.subr.mxu0 0.0
        %1251 = vmatpush1.msra.mxu0 0.0
        %1252 = vmatprep.mubr.f32.mxu0 0.0
        %1253 = vmatmul.mubr.f32.gmra.mrb[0].mxu0 %v1186
        %v1254 = vpop.f32.mrb[0].mxu0
        %v1255 = vadd.f32 %v1182, %v1254
        %v1256 = vpop.f32.mrb[0].mxu0
        %1257 = vdwg.mxu0
        %v1258 = vlaneseq
        %v1259 = vshrl.u32 %v1258, 7
        %v1260 = vsub.s32 5, %v1259
        %v1261 = vrot.slane %v284, %v1260
        %v1262 = vadd.f32 %v1255, %v1261
        %v1263 = vlaneseq
        %v1264 = vshrl.u32 %v1263, 7
        %v1265 = vsub.s32 6, %v1264
        %v1266 = vrot.slane %v284, %v1265
        %1268 = vrot.lane.b32.xlu0 %v1266, 32
        %v1269 = vpop.permute.xlu0 %1268
        %v1271 = vadd.f32 %v1255, %v1269
        %v1272 = vxor.u32 %v1271, 2147483648
        %v1273 = vmul.f32 %v1272, 1.442695
        %v1274 = vpow.pop %v1273
        %v1275 = vadd.f32 %v1274, 1.0
        %v1276 = vrcp.pop %v1275
        %v1277 = vmul.f32 1.0, %v1276
        %1279 = vrot.lane.b32.xlu0 %v1277, 96
        %v1280 = vpop.permute.xlu0 %1279
        %v1282 = vmul.f32 %v1262, %v1280
        %v1283 = vadd.f32 %v283, %v1282
        %1284 = vst.msk [vmem:[%s279] sm:$0xff] %vm285, %v1283
        %s1285 = sand.u32 %s146, 1
        %s1286 = scalar_lea.sflag [#allocation4], %s1285
        %s1287 = sand.u32 %s146, 1
        %s1288 = smul.addr %s1287, 8
        %s1289 = scalar_lea.vmem [#allocation8], %s1288
        // Predicated region
        $region53: #{tpu_custom_call.1} parent=39 // pred_check
          %p1290 = pneg %p156
        $region54: #{tpu_custom_call.1} parent=39 // pred_check_branch
          %1292 = sbr.rel (%p1290) target = $region56
        $region55: #{tpu_custom_call.1} parent=39 // pred_region
          %s1294 = ssub.s32 128, 128
          %1295 = vsyncadd %s1286, %s1294
          %s1296 = smul.addr %s23, 128
          %s1297 = scalar_lea.hbm %s5, %s1296
          %s1299 = sshll.u32 %s1289, 4
          %s1300 = int_to_ptr.vmem [resolvable:$true] %s1299
          %1302 = dma.vmem_to_hbm [thread:$0]  %s1300, 128, %s1297, %s1286
        $region56: #{tpu_custom_call.1} parent=39 // pred_fallthru
          _
      $region40: #{tpu_custom_call.1} parent=5 // pred_fallthru
        _
      %p1303 = scmp.le.s32.totalorder 2, %s18
      // Predicated region
      $region57: #{tpu_custom_call.1} parent=5 // pred_check
        %p1304 = pneg %p1303
      $region58: #{tpu_custom_call.1} parent=5 // pred_check_branch
        %1306 = sbr.rel (%p1304) target = $region60
      $region59: #{tpu_custom_call.1} parent=5 // pred_region
        %s1307 = ssub.s32 %s18, 2
        // Predicated region
        $region61: #{tpu_custom_call.1} parent=59 // pred_check
          %p1308 = pneg %p162
        $region62: #{tpu_custom_call.1} parent=59 // pred_check_branch
          %1310 = sbr.rel (%p1308) target = $region64
        $region63: #{tpu_custom_call.1} parent=59 // pred_region
          %s1311 = sand.u32 %s147, 1
          %s1312 = scalar_lea.sflag [#allocation4], %s1311
          %s1313 = sand.u32 %s147, 1
          %s1314 = smul.addr %s1313, 8
          %s1315 = scalar_lea.vmem [#allocation8], %s1314
          %1316 = dma.done %s1312, 128
        $region64: #{tpu_custom_call.1} parent=59 // pred_fallthru
          _
      $region60: #{tpu_custom_call.1} parent=5 // pred_fallthru
        _
    $region6: #{tpu_custom_call.1} parent=1 // loop_footer
      %s22 = sadd.s32 1, %s18
    $region7: #{tpu_custom_call.1} parent=1 // loop_footer_branch
      %17 = sbr.rel target = $region3
    $region8: #{tpu_custom_call.1} parent=1 // loop_exit
      _
    %1317 = vsyncpa [#allocation3], 1
    %s1318 = scalar_lea.sflag [#allocation3], 1
    %1319 = vsyncpa %s1318, 1
    %1320 = vsyncpa [#allocation6], 1
    %1321 = vsyncpa [#allocation4], 1
    %s1322 = scalar_lea.sflag [#allocation4], 1
    %1323 = vsyncpa %s1322, 1

</llo_original>
